<compile_context>
chip_gen: v6e
topology: v6e:2x2x1
jax: 0.10.0
libtpu: 0.0.40
codegen_flags: <defaults>
</compile_context>

<pallas_src>
import functools

import jax
import jax.numpy as jnp
from jax import lax
from jax.experimental import pallas as pl
from jax.experimental.pallas import tpu as pltpu


# ------------------------------ Pallas kernel ------------------------------- #

def _rnn_fused_kernel(T, B, H, Vp,
                      idsf_ref, idsb_ref, table_ref, wrec_ref,
                      w1_ref, b1_ref, w2_ref, b2_ref, w3_ref, b3_ref,
                      out_ref):
    """Fused Embedding -> bi-LSTM -> (Linear,ReLU,Linear,Tanh,Linear,Softmax).

    idsf_ref : (T*B, 1) int32  token id at time t            (row = t*B + b)
    idsb_ref : (T*B, 1) int32  token id at time T-1-t        (row = t*B + b)
    table_ref: (2*Vp, 8H)      doubled projected-embedding table, bias folded in,
                               gate columns ordered (i_f,i_b,f_f,f_b,o_f,o_b,g_f,g_b)
    wrec_ref : (2H, 8H)        fused fwd/bwd hidden->gate weight (block structure)
    w1_ref   : (T*2H, 2C)      fc1 weight, rows permuted to the per-step hidden layout
    w2_ref   : (2C, C), w3_ref: (C, S), biases (1, n)
    out_ref  : (B, S)          softmax probabilities
    """
    H2, H4, H6 = 2 * H, 4 * H, 6 * H

    # --- One MXU matmul = embedding gather + BOTH directions' input projection + bias ----
    iota = lax.broadcasted_iota(jnp.int32, (T * B, 2 * Vp), 1)
    onehot = ((iota == idsf_ref[...]).astype(jnp.float32)
              + (iota == idsb_ref[...] + Vp).astype(jnp.float32))
    xg = jnp.dot(onehot, table_ref[...], preferred_element_type=jnp.float32)  # (T*B, 8H)

    wrec = wrec_ref[...]          # (2H, 8H), loaded once (hoisted out of the loop)

    h_cat = None                  # (B, 2H) = [h_f | h_b]
    c_cat = None                  # (B, 2H) = [c_f | c_b]
    h_steps = []

    # --- Fused bidirectional recurrence: 1 matmul + 1 sigmoid + 2 tanh per step ----------
    for t in range(T):            # static unroll: T is small and fixed
        z = xg[t * B:(t + 1) * B, :]                       # fwd gates @ t | bwd gates @ T-1-t
        if t > 0:
            z = z + jnp.dot(h_cat, wrec, preferred_element_type=jnp.float32)
        s = jax.nn.sigmoid(z[:, :H6])                      # i_f,i_b,f_f,f_b,o_f,o_b
        g = jnp.tanh(z[:, H6:])                            # g_f,g_b
        i_cat, f_cat, o_cat = s[:, :H2], s[:, H2:H4], s[:, H4:H6]
        c_cat = i_cat * g if t == 0 else f_cat * c_cat + i_cat * g
        h_cat = o_cat * jnp.tanh(c_cat)
        h_steps.append(h_cat)                              # [h_f at t | h_b at T-1-t]

    # --- Head: fc1 in ONE matmul after the loop, then ReLU/Linear/Tanh/Linear/Softmax ----
    flat = jnp.concatenate(h_steps, axis=1)                # (B, T*2H), registers only
    h1 = jnp.maximum(
        jnp.dot(flat, w1_ref[...], preferred_element_type=jnp.float32) + b1_ref[...], 0.0)
    h2 = jnp.tanh(jnp.dot(h1, w2_ref[...], preferred_element_type=jnp.float32)
                  + b2_ref[...])
    logits = jnp.dot(h2, w3_ref[...], preferred_element_type=jnp.float32) + b3_ref[...]

    m = jnp.max(logits, axis=-1, keepdims=True)
    e = jnp.exp(logits - m)
    denom = jnp.sum(e, axis=-1, keepdims=True)
    r = pl.reciprocal(denom, approx=True)
    r = r * (2.0 - denom * r)        # one Newton step: stays well within the 2e-5 tolerance
    out_ref[...] = e * r


# ------------------------------ Host wrapper -------------------------------- #

_VMEM_SPEC = pl.BlockSpec(memory_space=pltpu.MemorySpace.VMEM)


def prepare_kernel_params(p, T):
    """One-time host-side weight prep: fold emb@Wih (+bias) into a doubled projected table,
    build the fused block-structured recurrent weight, permute gate columns so all sigmoid
    lanes are contiguous, and permute fc1 rows to the kernel's per-step hidden layout."""
    f32 = jnp.float32
    hi = lax.Precision.HIGHEST
    H = p["whh_f"].shape[1]
    V, E = p["emb"].shape
    Vp = ((V + 127) // 128) * 128
    H4, H8 = 4 * H, 8 * H

    # Column permutation: natural [fwd(i,f,g,o) | bwd(i,f,g,o)] -> (i_f,i_b,f_f,f_b,o_f,o_b,g_f,g_b)
    blk = jnp.array([0, 4, 1, 5, 3, 7, 2, 6])
    perm = (blk[:, None] * H + jnp.arange(H)[None, :]).reshape(-1)

    emb_pad = jnp.zeros((Vp, E), f32).at[:V].set(p["emb"].astype(f32))
    proj_f = jnp.dot(emb_pad, p["wih_f"].T.astype(f32), precision=hi)     # (Vp, 4H)
    proj_b = jnp.dot(emb_pad, p["wih_b"].T.astype(f32), precision=hi)     # (Vp, 4H)

    table_nat = jnp.zeros((2 * Vp, H8), f32)
    table_nat = table_nat.at[:Vp, :H4].set(proj_f + p["b_f"].astype(f32))   # bias folded in
    table_nat = table_nat.at[Vp:, H4:].set(proj_b + p["b_b"].astype(f32))
    table = table_nat[:, perm]                                              # (2Vp, 8H)

    wrec_nat = jnp.zeros((2 * H, H8), f32)
    wrec_nat = wrec_nat.at[:H, :H4].set(p["whh_f"].T.astype(f32))
    wrec_nat = wrec_nat.at[H:, H4:].set(p["whh_b"].T.astype(f32))
    wrec = wrec_nat[:, perm]                                                # (2H, 8H)

    # fc1: row block t must multiply [hf_t | hb_{T-1-t}]  ->  reverse the bwd rows over time.
    C2 = p["w1"].shape[0]
    w1T = p["w1"].T.astype(f32).reshape(T, 2, H, C2)
    w1k = jnp.stack([w1T[:, 0], w1T[::-1, 1]], axis=1).reshape(T * 2 * H, C2)

    return {
        "table": table, "wrec": wrec,
        "w1": w1k, "b1": p["b1"].astype(f32),
        "w2": p["w2"].T.astype(f32), "b2": p["b2"].astype(f32),
        "w3": p["w3"].T.astype(f32), "b3": p["b3"].astype(f32),
    }


@jax.jit
def rnn_forward(inputs, kp):
    B, T = inputs.shape
    H = kp["wrec"].shape[0] // 2
    S = kp["w3"].shape[1]
    Vp = kp["table"].shape[0] // 2

    # Tiny glue: time-major flattened ids (row = t*B + b), fwd and time-reversed.
    ids_f = jnp.transpose(inputs).reshape(T * B, 1).astype(jnp.int32)
    ids_b = jnp.transpose(inputs[:, ::-1]).reshape(T * B, 1).astype(jnp.int32)

    kernel = functools.partial(_rnn_fused_kernel, T, B, H, Vp)
    return pl.pallas_call(
        kernel,
        out_shape=jax.ShapeDtypeStruct((B, S), jnp.float32),
        in_specs=[_VMEM_SPEC] * 10,
        out_specs=_VMEM_SPEC,
    )(ids_f, ids_b, kp["table"], kp["wrec"], kp["w1"], kp["b1"],
      kp["w2"], kp["b2"], kp["w3"], kp["b3"])


# --------------------------- Pure-JAX reference ----------------------------- #

def _ref_forward(inputs, params):
    emb = jnp.take(params["emb"], inputs, axis=0).astype(jnp.float32)    # (B, T, E)
    emb_tb = jnp.transpose(emb, (1, 0, 2))                                # (T, B, E)
    B = emb.shape[0]
    H = params["whh_f"].shape[1]

    def direction(seq_tb, wih, whh, b):
        def scan_fn(carry, x):
            h, c = carry
            gates = x @ wih.T + h @ whh.T + b
            i, f, g, o = jnp.split(gates, 4, axis=-1)
            i = jax.nn.sigmoid(i); f = jax.nn.sigmoid(f)
            g = jnp.tanh(g); o = jax.nn.sigmoid(o)
            c = f * c + i * g
            h = o * jnp.tanh(c)
            return (h, c), h
        h0 = jnp.zeros((B, H), jnp.float32)
        c0 = jnp.zeros((B, H), jnp.float32)
        _, hs = lax.scan(scan_fn, (h0, c0), seq_tb)
        return hs

    hf = direction(emb_tb, params["wih_f"], params["whh_f"], params["b_f"])
    hb = direction(emb_tb[::-1], params["wih_b"], params["whh_b"], params["b_b"])[::-1]
    out_tb = jnp.concatenate([hf, hb], axis=-1)
    flat = jnp.transpose(out_tb, (1, 0, 2)).reshape(B, -1)

    h1 = jnp.maximum(flat @ params["w1"].T + params["b1"], 0.0)
    h2 = jnp.tanh(h1 @ params["w2"].T + params["b2"])
    logits = h2 @ params["w3"].T + params["b3"]
    return jax.nn.softmax(logits, axis=-1)


# ---------------------------------- Driver ---------------------------------- #

def _make_params(key, V, E, H, C, S):
    ks = jax.random.split(key, 16)
    s_lstm = 1.0 / jnp.sqrt(H)

    def u(k, shape, s):
        return jax.random.uniform(k, shape, jnp.float32, -s, s)

    return {
        "emb":   jax.random.normal(ks[0], (V, E), jnp.float32) * 0.1,
        # forward-direction LSTM (PyTorch gate order i,f,g,o)
        "wih_f": u(ks[1], (4 * H, E), s_lstm),
        "whh_f": u(ks[2], (4 * H, H), s_lstm),
        "b_f":   u(ks[3], (1, 4 * H), s_lstm),     # b_ih + b_hh combined
        # backward-direction LSTM
        "wih_b": u(ks[4], (4 * H, E), s_lstm),
        "whh_b": u(ks[5], (4 * H, H), s_lstm),
        "b_b":   u(ks[6], (1, 4 * H), s_lstm),
        # fc head
        "w1": u(ks[7],  (2 * C, 2 * H * C), 1.0 / jnp.sqrt(2 * H * C)),
        "b1": u(ks[8],  (1, 2 * C),         1.0 / jnp.sqrt(2 * H * C)),
        "w2": u(ks[9],  (C, 2 * C),         1.0 / jnp.sqrt(2 * C)),
        "b2": u(ks[10], (1, C),             1.0 / jnp.sqrt(2 * C)),
        "w3": u(ks[11], (S, C),             1.0 / jnp.sqrt(C)),
        "b3": u(ks[12], (1, S),             1.0 / jnp.sqrt(C)),
    }


if __name__ == "__main__":
    # Small, module-consistent shapes.
    dict_size = 50       # vocabulary size V
    embedding_dim = 32   # E
    hidden_size = 32     # H
    context_size = 8     # = sequence length T (fc input is 2*H*context_size)
    type_size = 5        # S
    batch = 2            # B

    key = jax.random.PRNGKey(0)
    k_param, k_tok = jax.random.split(key)
    params = _make_params(k_param, dict_size, embedding_dim, hidden_size,
                          context_size, type_size)
    inputs = jax.random.randint(k_tok, (batch, context_size), 0, dict_size,
                                dtype=jnp.int32)

    kparams = prepare_kernel_params(params, context_size)

    probs = jax.block_until_ready(rnn_forward(inputs, kparams))
    ref = jax.block_until_ready(_ref_forward(inputs, params))

    assert probs.shape == (batch, type_size), probs.shape
    assert jnp.allclose(jnp.sum(probs, axis=-1), 1.0, atol=1e-5)
    assert jnp.allclose(probs, ref, atol=2e-5, rtol=2e-5), (probs, ref)

    print("KERNEL_OK")
</pallas_src>

<mosaic_0001>
module attributes {stable_mosaic.version = 11 : i64} {
  func.func @_rnn_fused_kernel(%arg0: memref<16x1xi32, #tpu.memory_space<vmem>>, %arg1: memref<16x1xi32, #tpu.memory_space<vmem>>, %arg2: memref<256x256xf32, #tpu.memory_space<vmem>>, %arg3: memref<64x256xf32, #tpu.memory_space<vmem>>, %arg4: memref<512x16xf32, #tpu.memory_space<vmem>>, %arg5: memref<1x16xf32, #tpu.memory_space<vmem>>, %arg6: memref<16x8xf32, #tpu.memory_space<vmem>>, %arg7: memref<1x8xf32, #tpu.memory_space<vmem>>, %arg8: memref<8x5xf32, #tpu.memory_space<vmem>>, %arg9: memref<1x5xf32, #tpu.memory_space<vmem>>, %arg10: memref<2x5xf32, #tpu.memory_space<vmem>>) attributes {dimension_semantics = [], scalar_prefetch = 0 : i64, scratch_operands = 0 : i64, tpu.core_type = #tpu.core_type<tc>} {
    %0 = tpu.iota {dimensions = array<i32: 1>} : vector<16x256xi32>
    %c0 = arith.constant 0 : index
    %c0_0 = arith.constant 0 : index
    %1 = vector.load %arg0[%c0, %c0_0] : memref<16x1xi32, #tpu.memory_space<vmem>>, vector<16x1xi32>
    %2 = vector.broadcast %1 : vector<16x1xi32> to vector<16x256xi32>
    %3 = arith.cmpi eq, %0, %2 : vector<16x256xi32>
    %4 = arith.extui %3 : vector<16x256xi1> to vector<16x256xi32>
    %5 = arith.sitofp %4 : vector<16x256xi32> to vector<16x256xf32>
    %c0_1 = arith.constant 0 : index
    %c0_2 = arith.constant 0 : index
    %6 = vector.load %arg1[%c0_1, %c0_2] : memref<16x1xi32, #tpu.memory_space<vmem>>, vector<16x1xi32>
    %c128_i32 = arith.constant 128 : i32
    %7 = vector.broadcast %c128_i32 : i32 to vector<16x1xi32>
    %8 = arith.addi %6, %7 : vector<16x1xi32>
    %9 = vector.broadcast %8 : vector<16x1xi32> to vector<16x256xi32>
    %10 = arith.cmpi eq, %0, %9 : vector<16x256xi32>
    %11 = arith.extui %10 : vector<16x256xi1> to vector<16x256xi32>
    %12 = arith.sitofp %11 : vector<16x256xi32> to vector<16x256xf32>
    %13 = arith.addf %5, %12 : vector<16x256xf32>
    %c0_3 = arith.constant 0 : index
    %c0_4 = arith.constant 0 : index
    %14 = vector.load %arg2[%c0_3, %c0_4] : memref<256x256xf32, #tpu.memory_space<vmem>>, vector<256x256xf32>
    %cst = arith.constant dense<0.000000e+00> : vector<16x256xf32>
    %15 = tpu.matmul %13, %14, %cst {dimension_numbers = #tpu.dot_dimension_numbers<[1], [0], [0], [1], [0, 0, 1, 1], [], []>} : vector<16x256xf32>, vector<256x256xf32>, vector<16x256xf32> -> vector<16x256xf32>
    %c0_5 = arith.constant 0 : index
    %c0_6 = arith.constant 0 : index
    %16 = vector.load %arg3[%c0_5, %c0_6] : memref<64x256xf32, #tpu.memory_space<vmem>>, vector<64x256xf32>
    %17 = vector.extract_strided_slice %15 {offsets = [0, 0], sizes = [2, 256], strides = [1, 1]} : vector<16x256xf32> to vector<2x256xf32>
    %18 = vector.extract_strided_slice %17 {offsets = [0, 0], sizes = [2, 192], strides = [1, 1]} : vector<2x256xf32> to vector<2x192xf32>
    %19 = arith.negf %18 : vector<2x192xf32>
    %20 = math.exp %19 : vector<2x192xf32>
    %cst_7 = arith.constant 1.000000e+00 : f32
    %21 = vector.broadcast %cst_7 : f32 to vector<2x192xf32>
    %22 = arith.addf %21, %20 : vector<2x192xf32>
    %23 = arith.divf %21, %22 : vector<2x192xf32>
    %24 = vector.extract_strided_slice %17 {offsets = [0, 192], sizes = [2, 64], strides = [1, 1]} : vector<2x256xf32> to vector<2x64xf32>
    %25 = math.tanh %24 : vector<2x64xf32>
    %26 = vector.extract_strided_slice %23 {offsets = [0, 0], sizes = [2, 64], strides = [1, 1]} : vector<2x192xf32> to vector<2x64xf32>
    %27 = vector.extract_strided_slice %23 {offsets = [0, 128], sizes = [2, 64], strides = [1, 1]} : vector<2x192xf32> to vector<2x64xf32>
    %28 = arith.mulf %26, %25 : vector<2x64xf32>
    %29 = math.tanh %28 : vector<2x64xf32>
    %30 = arith.mulf %27, %29 : vector<2x64xf32>
    %31 = vector.extract_strided_slice %15 {offsets = [2, 0], sizes = [2, 256], strides = [1, 1]} : vector<16x256xf32> to vector<2x256xf32>
    %cst_8 = arith.constant dense<0.000000e+00> : vector<2x256xf32>
    %32 = tpu.matmul %30, %16, %cst_8 {dimension_numbers = #tpu.dot_dimension_numbers<[1], [0], [0], [1], [0, 0, 1, 1], [], []>} : vector<2x64xf32>, vector<64x256xf32>, vector<2x256xf32> -> vector<2x256xf32>
    %33 = arith.addf %31, %32 : vector<2x256xf32>
    %34 = vector.extract_strided_slice %33 {offsets = [0, 0], sizes = [2, 192], strides = [1, 1]} : vector<2x256xf32> to vector<2x192xf32>
    %35 = arith.negf %34 : vector<2x192xf32>
    %36 = math.exp %35 : vector<2x192xf32>
    %cst_9 = arith.constant 1.000000e+00 : f32
    %37 = vector.broadcast %cst_9 : f32 to vector<2x192xf32>
    %38 = arith.addf %37, %36 : vector<2x192xf32>
    %39 = arith.divf %37, %38 : vector<2x192xf32>
    %40 = vector.extract_strided_slice %33 {offsets = [0, 192], sizes = [2, 64], strides = [1, 1]} : vector<2x256xf32> to vector<2x64xf32>
    %41 = math.tanh %40 : vector<2x64xf32>
    %42 = vector.extract_strided_slice %39 {offsets = [0, 0], sizes = [2, 64], strides = [1, 1]} : vector<2x192xf32> to vector<2x64xf32>
    %43 = vector.extract_strided_slice %39 {offsets = [0, 64], sizes = [2, 64], strides = [1, 1]} : vector<2x192xf32> to vector<2x64xf32>
    %44 = vector.extract_strided_slice %39 {offsets = [0, 128], sizes = [2, 64], strides = [1, 1]} : vector<2x192xf32> to vector<2x64xf32>
    %45 = arith.mulf %43, %28 : vector<2x64xf32>
    %46 = arith.mulf %42, %41 : vector<2x64xf32>
    %47 = arith.addf %45, %46 : vector<2x64xf32>
    %48 = math.tanh %47 : vector<2x64xf32>
    %49 = arith.mulf %44, %48 : vector<2x64xf32>
    %50 = vector.extract_strided_slice %15 {offsets = [4, 0], sizes = [2, 256], strides = [1, 1]} : vector<16x256xf32> to vector<2x256xf32>
    %cst_10 = arith.constant dense<0.000000e+00> : vector<2x256xf32>
    %51 = tpu.matmul %49, %16, %cst_10 {dimension_numbers = #tpu.dot_dimension_numbers<[1], [0], [0], [1], [0, 0, 1, 1], [], []>} : vector<2x64xf32>, vector<64x256xf32>, vector<2x256xf32> -> vector<2x256xf32>
    %52 = arith.addf %50, %51 : vector<2x256xf32>
    %53 = vector.extract_strided_slice %52 {offsets = [0, 0], sizes = [2, 192], strides = [1, 1]} : vector<2x256xf32> to vector<2x192xf32>
    %54 = arith.negf %53 : vector<2x192xf32>
    %55 = math.exp %54 : vector<2x192xf32>
    %cst_11 = arith.constant 1.000000e+00 : f32
    %56 = vector.broadcast %cst_11 : f32 to vector<2x192xf32>
    %57 = arith.addf %56, %55 : vector<2x192xf32>
    %58 = arith.divf %56, %57 : vector<2x192xf32>
    %59 = vector.extract_strided_slice %52 {offsets = [0, 192], sizes = [2, 64], strides = [1, 1]} : vector<2x256xf32> to vector<2x64xf32>
    %60 = math.tanh %59 : vector<2x64xf32>
    %61 = vector.extract_strided_slice %58 {offsets = [0, 0], sizes = [2, 64], strides = [1, 1]} : vector<2x192xf32> to vector<2x64xf32>
    %62 = vector.extract_strided_slice %58 {offsets = [0, 64], sizes = [2, 64], strides = [1, 1]} : vector<2x192xf32> to vector<2x64xf32>
    %63 = vector.extract_strided_slice %58 {offsets = [0, 128], sizes = [2, 64], strides = [1, 1]} : vector<2x192xf32> to vector<2x64xf32>
    %64 = arith.mulf %62, %47 : vector<2x64xf32>
    %65 = arith.mulf %61, %60 : vector<2x64xf32>
    %66 = arith.addf %64, %65 : vector<2x64xf32>
    %67 = math.tanh %66 : vector<2x64xf32>
    %68 = arith.mulf %63, %67 : vector<2x64xf32>
    %69 = vector.extract_strided_slice %15 {offsets = [6, 0], sizes = [2, 256], strides = [1, 1]} : vector<16x256xf32> to vector<2x256xf32>
    %cst_12 = arith.constant dense<0.000000e+00> : vector<2x256xf32>
    %70 = tpu.matmul %68, %16, %cst_12 {dimension_numbers = #tpu.dot_dimension_numbers<[1], [0], [0], [1], [0, 0, 1, 1], [], []>} : vector<2x64xf32>, vector<64x256xf32>, vector<2x256xf32> -> vector<2x256xf32>
    %71 = arith.addf %69, %70 : vector<2x256xf32>
    %72 = vector.extract_strided_slice %71 {offsets = [0, 0], sizes = [2, 192], strides = [1, 1]} : vector<2x256xf32> to vector<2x192xf32>
    %73 = arith.negf %72 : vector<2x192xf32>
    %74 = math.exp %73 : vector<2x192xf32>
    %cst_13 = arith.constant 1.000000e+00 : f32
    %75 = vector.broadcast %cst_13 : f32 to vector<2x192xf32>
    %76 = arith.addf %75, %74 : vector<2x192xf32>
    %77 = arith.divf %75, %76 : vector<2x192xf32>
    %78 = vector.extract_strided_slice %71 {offsets = [0, 192], sizes = [2, 64], strides = [1, 1]} : vector<2x256xf32> to vector<2x64xf32>
    %79 = math.tanh %78 : vector<2x64xf32>
    %80 = vector.extract_strided_slice %77 {offsets = [0, 0], sizes = [2, 64], strides = [1, 1]} : vector<2x192xf32> to vector<2x64xf32>
    %81 = vector.extract_strided_slice %77 {offsets = [0, 64], sizes = [2, 64], strides = [1, 1]} : vector<2x192xf32> to vector<2x64xf32>
    %82 = vector.extract_strided_slice %77 {offsets = [0, 128], sizes = [2, 64], strides = [1, 1]} : vector<2x192xf32> to vector<2x64xf32>
    %83 = arith.mulf %81, %66 : vector<2x64xf32>
    %84 = arith.mulf %80, %79 : vector<2x64xf32>
    %85 = arith.addf %83, %84 : vector<2x64xf32>
    %86 = math.tanh %85 : vector<2x64xf32>
    %87 = arith.mulf %82, %86 : vector<2x64xf32>
    %88 = vector.extract_strided_slice %15 {offsets = [8, 0], sizes = [2, 256], strides = [1, 1]} : vector<16x256xf32> to vector<2x256xf32>
    %cst_14 = arith.constant dense<0.000000e+00> : vector<2x256xf32>
    %89 = tpu.matmul %87, %16, %cst_14 {dimension_numbers = #tpu.dot_dimension_numbers<[1], [0], [0], [1], [0, 0, 1, 1], [], []>} : vector<2x64xf32>, vector<64x256xf32>, vector<2x256xf32> -> vector<2x256xf32>
    %90 = arith.addf %88, %89 : vector<2x256xf32>
    %91 = vector.extract_strided_slice %90 {offsets = [0, 0], sizes = [2, 192], strides = [1, 1]} : vector<2x256xf32> to vector<2x192xf32>
    %92 = arith.negf %91 : vector<2x192xf32>
    %93 = math.exp %92 : vector<2x192xf32>
    %cst_15 = arith.constant 1.000000e+00 : f32
    %94 = vector.broadcast %cst_15 : f32 to vector<2x192xf32>
    %95 = arith.addf %94, %93 : vector<2x192xf32>
    %96 = arith.divf %94, %95 : vector<2x192xf32>
    %97 = vector.extract_strided_slice %90 {offsets = [0, 192], sizes = [2, 64], strides = [1, 1]} : vector<2x256xf32> to vector<2x64xf32>
    %98 = math.tanh %97 : vector<2x64xf32>
    %99 = vector.extract_strided_slice %96 {offsets = [0, 0], sizes = [2, 64], strides = [1, 1]} : vector<2x192xf32> to vector<2x64xf32>
    %100 = vector.extract_strided_slice %96 {offsets = [0, 64], sizes = [2, 64], strides = [1, 1]} : vector<2x192xf32> to vector<2x64xf32>
    %101 = vector.extract_strided_slice %96 {offsets = [0, 128], sizes = [2, 64], strides = [1, 1]} : vector<2x192xf32> to vector<2x64xf32>
    %102 = arith.mulf %100, %85 : vector<2x64xf32>
    %103 = arith.mulf %99, %98 : vector<2x64xf32>
    %104 = arith.addf %102, %103 : vector<2x64xf32>
    %105 = math.tanh %104 : vector<2x64xf32>
    %106 = arith.mulf %101, %105 : vector<2x64xf32>
    %107 = vector.extract_strided_slice %15 {offsets = [10, 0], sizes = [2, 256], strides = [1, 1]} : vector<16x256xf32> to vector<2x256xf32>
    %cst_16 = arith.constant dense<0.000000e+00> : vector<2x256xf32>
    %108 = tpu.matmul %106, %16, %cst_16 {dimension_numbers = #tpu.dot_dimension_numbers<[1], [0], [0], [1], [0, 0, 1, 1], [], []>} : vector<2x64xf32>, vector<64x256xf32>, vector<2x256xf32> -> vector<2x256xf32>
    %109 = arith.addf %107, %108 : vector<2x256xf32>
    %110 = vector.extract_strided_slice %109 {offsets = [0, 0], sizes = [2, 192], strides = [1, 1]} : vector<2x256xf32> to vector<2x192xf32>
    %111 = arith.negf %110 : vector<2x192xf32>
    %112 = math.exp %111 : vector<2x192xf32>
    %cst_17 = arith.constant 1.000000e+00 : f32
    %113 = vector.broadcast %cst_17 : f32 to vector<2x192xf32>
    %114 = arith.addf %113, %112 : vector<2x192xf32>
    %115 = arith.divf %113, %114 : vector<2x192xf32>
    %116 = vector.extract_strided_slice %109 {offsets = [0, 192], sizes = [2, 64], strides = [1, 1]} : vector<2x256xf32> to vector<2x64xf32>
    %117 = math.tanh %116 : vector<2x64xf32>
    %118 = vector.extract_strided_slice %115 {offsets = [0, 0], sizes = [2, 64], strides = [1, 1]} : vector<2x192xf32> to vector<2x64xf32>
    %119 = vector.extract_strided_slice %115 {offsets = [0, 64], sizes = [2, 64], strides = [1, 1]} : vector<2x192xf32> to vector<2x64xf32>
    %120 = vector.extract_strided_slice %115 {offsets = [0, 128], sizes = [2, 64], strides = [1, 1]} : vector<2x192xf32> to vector<2x64xf32>
    %121 = arith.mulf %119, %104 : vector<2x64xf32>
    %122 = arith.mulf %118, %117 : vector<2x64xf32>
    %123 = arith.addf %121, %122 : vector<2x64xf32>
    %124 = math.tanh %123 : vector<2x64xf32>
    %125 = arith.mulf %120, %124 : vector<2x64xf32>
    %126 = vector.extract_strided_slice %15 {offsets = [12, 0], sizes = [2, 256], strides = [1, 1]} : vector<16x256xf32> to vector<2x256xf32>
    %cst_18 = arith.constant dense<0.000000e+00> : vector<2x256xf32>
    %127 = tpu.matmul %125, %16, %cst_18 {dimension_numbers = #tpu.dot_dimension_numbers<[1], [0], [0], [1], [0, 0, 1, 1], [], []>} : vector<2x64xf32>, vector<64x256xf32>, vector<2x256xf32> -> vector<2x256xf32>
    %128 = arith.addf %126, %127 : vector<2x256xf32>
    %129 = vector.extract_strided_slice %128 {offsets = [0, 0], sizes = [2, 192], strides = [1, 1]} : vector<2x256xf32> to vector<2x192xf32>
    %130 = arith.negf %129 : vector<2x192xf32>
    %131 = math.exp %130 : vector<2x192xf32>
    %cst_19 = arith.constant 1.000000e+00 : f32
    %132 = vector.broadcast %cst_19 : f32 to vector<2x192xf32>
    %133 = arith.addf %132, %131 : vector<2x192xf32>
    %134 = arith.divf %132, %133 : vector<2x192xf32>
    %135 = vector.extract_strided_slice %128 {offsets = [0, 192], sizes = [2, 64], strides = [1, 1]} : vector<2x256xf32> to vector<2x64xf32>
    %136 = math.tanh %135 : vector<2x64xf32>
    %137 = vector.extract_strided_slice %134 {offsets = [0, 0], sizes = [2, 64], strides = [1, 1]} : vector<2x192xf32> to vector<2x64xf32>
    %138 = vector.extract_strided_slice %134 {offsets = [0, 64], sizes = [2, 64], strides = [1, 1]} : vector<2x192xf32> to vector<2x64xf32>
    %139 = vector.extract_strided_slice %134 {offsets = [0, 128], sizes = [2, 64], strides = [1, 1]} : vector<2x192xf32> to vector<2x64xf32>
    %140 = arith.mulf %138, %123 : vector<2x64xf32>
    %141 = arith.mulf %137, %136 : vector<2x64xf32>
    %142 = arith.addf %140, %141 : vector<2x64xf32>
    %143 = math.tanh %142 : vector<2x64xf32>
    %144 = arith.mulf %139, %143 : vector<2x64xf32>
    %145 = vector.extract_strided_slice %15 {offsets = [14, 0], sizes = [2, 256], strides = [1, 1]} : vector<16x256xf32> to vector<2x256xf32>
    %cst_20 = arith.constant dense<0.000000e+00> : vector<2x256xf32>
    %146 = tpu.matmul %144, %16, %cst_20 {dimension_numbers = #tpu.dot_dimension_numbers<[1], [0], [0], [1], [0, 0, 1, 1], [], []>} : vector<2x64xf32>, vector<64x256xf32>, vector<2x256xf32> -> vector<2x256xf32>
    %147 = arith.addf %145, %146 : vector<2x256xf32>
    %148 = vector.extract_strided_slice %147 {offsets = [0, 0], sizes = [2, 192], strides = [1, 1]} : vector<2x256xf32> to vector<2x192xf32>
    %149 = arith.negf %148 : vector<2x192xf32>
    %150 = math.exp %149 : vector<2x192xf32>
    %cst_21 = arith.constant 1.000000e+00 : f32
    %151 = vector.broadcast %cst_21 : f32 to vector<2x192xf32>
    %152 = arith.addf %151, %150 : vector<2x192xf32>
    %153 = arith.divf %151, %152 : vector<2x192xf32>
    %154 = vector.extract_strided_slice %147 {offsets = [0, 192], sizes = [2, 64], strides = [1, 1]} : vector<2x256xf32> to vector<2x64xf32>
    %155 = math.tanh %154 : vector<2x64xf32>
    %156 = vector.extract_strided_slice %153 {offsets = [0, 0], sizes = [2, 64], strides = [1, 1]} : vector<2x192xf32> to vector<2x64xf32>
    %157 = vector.extract_strided_slice %153 {offsets = [0, 64], sizes = [2, 64], strides = [1, 1]} : vector<2x192xf32> to vector<2x64xf32>
    %158 = vector.extract_strided_slice %153 {offsets = [0, 128], sizes = [2, 64], strides = [1, 1]} : vector<2x192xf32> to vector<2x64xf32>
    %159 = arith.mulf %157, %142 : vector<2x64xf32>
    %160 = arith.mulf %156, %155 : vector<2x64xf32>
    %161 = arith.addf %159, %160 : vector<2x64xf32>
    %162 = math.tanh %161 : vector<2x64xf32>
    %163 = arith.mulf %158, %162 : vector<2x64xf32>
    %164 = tpu.concatenate %30, %49, %68, %87, %106, %125, %144, %163 in 1 : vector<2x64xf32>, vector<2x64xf32>, vector<2x64xf32>, vector<2x64xf32>, vector<2x64xf32>, vector<2x64xf32>, vector<2x64xf32>, vector<2x64xf32> -> vector<2x512xf32>
    %c0_22 = arith.constant 0 : index
    %c0_23 = arith.constant 0 : index
    %165 = vector.load %arg4[%c0_22, %c0_23] : memref<512x16xf32, #tpu.memory_space<vmem>>, vector<512x16xf32>
    %cst_24 = arith.constant dense<0.000000e+00> : vector<2x16xf32>
    %166 = tpu.matmul %164, %165, %cst_24 {dimension_numbers = #tpu.dot_dimension_numbers<[1], [0], [0], [1], [0, 0, 1, 1], [], []>} : vector<2x512xf32>, vector<512x16xf32>, vector<2x16xf32> -> vector<2x16xf32>
    %c0_25 = arith.constant 0 : index
    %c0_26 = arith.constant 0 : index
    %167 = vector.load %arg5[%c0_25, %c0_26] : memref<1x16xf32, #tpu.memory_space<vmem>>, vector<1x16xf32>
    %168 = vector.broadcast %167 : vector<1x16xf32> to vector<2x16xf32>
    %169 = arith.addf %166, %168 : vector<2x16xf32>
    %cst_27 = arith.constant 0.000000e+00 : f32
    %170 = vector.broadcast %cst_27 : f32 to vector<2x16xf32>
    %171 = arith.maximumf %169, %170 : vector<2x16xf32>
    %c0_28 = arith.constant 0 : index
    %c0_29 = arith.constant 0 : index
    %172 = vector.load %arg6[%c0_28, %c0_29] : memref<16x8xf32, #tpu.memory_space<vmem>>, vector<16x8xf32>
    %cst_30 = arith.constant dense<0.000000e+00> : vector<2x8xf32>
    %173 = tpu.matmul %171, %172, %cst_30 {dimension_numbers = #tpu.dot_dimension_numbers<[1], [0], [0], [1], [0, 0, 1, 1], [], []>} : vector<2x16xf32>, vector<16x8xf32>, vector<2x8xf32> -> vector<2x8xf32>
    %c0_31 = arith.constant 0 : index
    %c0_32 = arith.constant 0 : index
    %174 = vector.load %arg7[%c0_31, %c0_32] : memref<1x8xf32, #tpu.memory_space<vmem>>, vector<1x8xf32>
    %175 = vector.broadcast %174 : vector<1x8xf32> to vector<2x8xf32>
    %176 = arith.addf %173, %175 : vector<2x8xf32>
    %177 = math.tanh %176 : vector<2x8xf32>
    %c0_33 = arith.constant 0 : index
    %c0_34 = arith.constant 0 : index
    %178 = vector.load %arg8[%c0_33, %c0_34] : memref<8x5xf32, #tpu.memory_space<vmem>>, vector<8x5xf32>
    %cst_35 = arith.constant dense<0.000000e+00> : vector<2x5xf32>
    %179 = tpu.matmul %177, %178, %cst_35 {dimension_numbers = #tpu.dot_dimension_numbers<[1], [0], [0], [1], [0, 0, 1, 1], [], []>} : vector<2x8xf32>, vector<8x5xf32>, vector<2x5xf32> -> vector<2x5xf32>
    %c0_36 = arith.constant 0 : index
    %c0_37 = arith.constant 0 : index
    %180 = vector.load %arg9[%c0_36, %c0_37] : memref<1x5xf32, #tpu.memory_space<vmem>>, vector<1x5xf32>
    %181 = vector.broadcast %180 : vector<1x5xf32> to vector<2x5xf32>
    %182 = arith.addf %179, %181 : vector<2x5xf32>
    %cst_38 = arith.constant dense<0xFF800000> : vector<2xf32>
    %183 = vector.multi_reduction <maximumf>, %182, %cst_38 [1] : vector<2x5xf32> to vector<2xf32>
    %184 = vector.shape_cast %183 : vector<2xf32> to vector<2x1xf32>
    %185 = vector.broadcast %184 : vector<2x1xf32> to vector<2x5xf32>
    %186 = arith.subf %182, %185 : vector<2x5xf32>
    %187 = math.exp %186 : vector<2x5xf32>
    %cst_39 = arith.constant dense<0.000000e+00> : vector<2xf32>
    %188 = vector.multi_reduction <add>, %187, %cst_39 [1] : vector<2x5xf32> to vector<2xf32>
    %189 = vector.shape_cast %188 : vector<2xf32> to vector<2x1xf32>
    %190 = tpu.reciprocal %189 {approx = true} : vector<2x1xf32> -> vector<2x1xf32>
    %191 = arith.mulf %189, %190 : vector<2x1xf32>
    %cst_40 = arith.constant 2.000000e+00 : f32
    %192 = vector.broadcast %cst_40 : f32 to vector<2x1xf32>
    %193 = arith.subf %192, %191 : vector<2x1xf32>
    %194 = arith.mulf %190, %193 : vector<2x1xf32>
    %195 = vector.broadcast %194 : vector<2x1xf32> to vector<2x5xf32>
    %196 = arith.mulf %187, %195 : vector<2x5xf32>
    %c0_41 = arith.constant 0 : index
    %c0_42 = arith.constant 0 : index
    %197 = vector.load %arg10[%c0_41, %c0_42] : memref<2x5xf32, #tpu.memory_space<vmem>>, vector<2x5xf32>
    tpu.vector_store %arg10[%c0_41, %c0_42], %196 {strides = array<i32>} : memref<2x5xf32, #tpu.memory_space<vmem>>, vector<2x5xf32>,
    return
  }
}

</mosaic_0001>

<llo_original>
// kernel: rnn_forward.1
$region0: #{rnn_forward.1}
  #allocation0 [shape = 'u32[]', space=smem, size = 0x4, offset = 0x4, fixed_abs, tag = 'smem constant byte address 0x4 - core index']
  #allocation1 [shape = 'u32[144,128]{1,0:T(1,128)}', space=vmem, size = 0x12000, scoped, tag = 'internal scratch']
  %s0 = inlined_call_operand.vmem [shape: s32[16,1], index: 0, kind: input, shape index: {}]
  %s1 = inlined_call_operand.vmem [shape: s32[16,1], index: 1, kind: input, shape index: {}]
  %s2 = inlined_call_operand.vmem [shape: f32[256,256], index: 2, kind: input, shape index: {}]
  %s3 = inlined_call_operand.vmem [shape: f32[64,256], index: 3, kind: input, shape index: {}]
  %s4 = inlined_call_operand.vmem [shape: f32[512,16], index: 4, kind: input, shape index: {}]
  %s5 = inlined_call_operand.vmem [shape: f32[1,16], index: 5, kind: input, shape index: {}]
  %s6 = inlined_call_operand.vmem [shape: f32[16,8], index: 6, kind: input, shape index: {}]
  %s7 = inlined_call_operand.vmem [shape: f32[1,8], index: 7, kind: input, shape index: {}]
  %s8 = inlined_call_operand.vmem [shape: f32[8,5], index: 8, kind: input, shape index: {}]
  %s9 = inlined_call_operand.vmem [shape: f32[1,5], index: 9, kind: input, shape index: {}]
  %s10 = inlined_call_operand.hbm [shape: f32[2,5], index: 10, kind: output, shape index: {}]
  %s11 = sld [smem:[#allocation0]]
  $region50: #{rnn_forward.1} parent=0
    _
  %s13 = ssub.s32 1, %s11
  %s14 = scalar_select 0, %s13, %s11
  $region1: #{rnn_forward.1} parent=0
    #allocation2 [shape = 'u8[1024]{0}', space=vmem, size = 0x400, scoped, tag = 'output window, operand 0, single buffered']
    #allocation3 [shape = 's32[1]{0}', space=sflag, size = 0x4, scoped, tag = 'scoped memory for rnn_forward.1']
    %15 = vsyncpa [#allocation3], 0
    // Predicated region
    $region2: #{rnn_forward.1} parent=1 // pred_check
      _
    $region3: #{rnn_forward.1} parent=1 // pred_check_branch
      %17 = sbr.rel (0) target = $region5
    $region4: #{rnn_forward.1} parent=1 // pred_region
      _
    $region5: #{rnn_forward.1} parent=1 // pred_fallthru
      _
    // Predicated region
    $region6: #{rnn_forward.1} parent=1 // pred_check
      _
    $region7: #{rnn_forward.1} parent=1 // pred_check_branch
      %19 = sbr.rel (0) target = $region9
    $region8: #{rnn_forward.1} parent=1 // pred_region
      _
    $region9: #{rnn_forward.1} parent=1 // pred_fallthru
      _
    // Predicated region
    $region10: #{rnn_forward.1} parent=1 // pred_check
      _
    $region11: #{rnn_forward.1} parent=1 // pred_check_branch
      %21 = sbr.rel (0) target = $region13
    $region12: #{rnn_forward.1} parent=1 // pred_region
      _
    $region13: #{rnn_forward.1} parent=1 // pred_fallthru
      _
    // Predicated region
    $region14: #{rnn_forward.1} parent=1 // pred_check
      _
    $region15: #{rnn_forward.1} parent=1 // pred_check_branch
      %23 = sbr.rel (0) target = $region17
    $region16: #{rnn_forward.1} parent=1 // pred_region
      _
    $region17: #{rnn_forward.1} parent=1 // pred_fallthru
      _
    // Predicated region
    $region18: #{rnn_forward.1} parent=1 // pred_check
      _
    $region19: #{rnn_forward.1} parent=1 // pred_check_branch
      %25 = sbr.rel (0) target = $region21
    $region20: #{rnn_forward.1} parent=1 // pred_region
      _
    $region21: #{rnn_forward.1} parent=1 // pred_fallthru
      _
    // Predicated region
    $region22: #{rnn_forward.1} parent=1 // pred_check
      _
    $region23: #{rnn_forward.1} parent=1 // pred_check_branch
      %27 = sbr.rel (0) target = $region25
    $region24: #{rnn_forward.1} parent=1 // pred_region
      _
    $region25: #{rnn_forward.1} parent=1 // pred_fallthru
      _
    // Predicated region
    $region26: #{rnn_forward.1} parent=1 // pred_check
      _
    $region27: #{rnn_forward.1} parent=1 // pred_check_branch
      %29 = sbr.rel (0) target = $region29
    $region28: #{rnn_forward.1} parent=1 // pred_region
      _
    $region29: #{rnn_forward.1} parent=1 // pred_fallthru
      _
    // Predicated region
    $region30: #{rnn_forward.1} parent=1 // pred_check
      _
    $region31: #{rnn_forward.1} parent=1 // pred_check_branch
      %31 = sbr.rel (0) target = $region33
    $region32: #{rnn_forward.1} parent=1 // pred_region
      _
    $region33: #{rnn_forward.1} parent=1 // pred_fallthru
      _
    // Predicated region
    $region34: #{rnn_forward.1} parent=1 // pred_check
      _
    $region35: #{rnn_forward.1} parent=1 // pred_check_branch
      %33 = sbr.rel (0) target = $region37
    $region36: #{rnn_forward.1} parent=1 // pred_region
      _
    $region37: #{rnn_forward.1} parent=1 // pred_fallthru
      _
    // Predicated region
    $region38: #{rnn_forward.1} parent=1 // pred_check
      _
    $region39: #{rnn_forward.1} parent=1 // pred_check_branch
      %35 = sbr.rel (0) target = $region41
    $region40: #{rnn_forward.1} parent=1 // pred_region
      _
    $region41: #{rnn_forward.1} parent=1 // pred_fallthru
      _
    %v36 = vlaneseq
    %v37 = vand.u32 %v36, 127
    %v38 = vadd.s32 %v37, 128
    %v39 = vld [vmem:[%s0] sm:$0xff]
    %v40 = vld [vmem:[%s0 + $0x8] sm:$0xff]
    %41 = vset.pattern.permute.xlu0 0
    %42 = vperm.xlu0 %41, %v39
    %v43 = vpop.permute.xlu0 %42
    %44 = vset.pattern.permute.xlu0 0
    %45 = vperm.xlu0 %44, %v40
    %v46 = vpop.permute.xlu0 %45
    %vm47 = vcmp.eq.s32.totalorder %v37, %v43
    %vm48 = vcmp.eq.s32.totalorder %v38, %v43
    %vm49 = vcmp.eq.s32.totalorder %v37, %v46
    %vm50 = vcmp.eq.s32.totalorder %v38, %v46
    %v51 = vsel %vm47, 1, 0
    %v52 = vsel %vm48, 1, 0
    %v53 = vsel %vm49, 1, 0
    %v54 = vsel %vm50, 1, 0
    %v55 = vcvt.s32.f32 %v51
    %v56 = vcvt.s32.f32 %v52
    %v57 = vcvt.s32.f32 %v53
    %v58 = vcvt.s32.f32 %v54
    %v59 = vld [vmem:[%s1] sm:$0xff]
    %v60 = vld [vmem:[%s1 + $0x8] sm:$0xff]
    %v61 = vadd.s32 %v59, 128
    %v62 = vadd.s32 %v60, 128
    %63 = vset.pattern.permute.xlu0 0
    %64 = vperm.xlu0 %63, %v61
    %v65 = vpop.permute.xlu0 %64
    %66 = vset.pattern.permute.xlu0 0
    %67 = vperm.xlu0 %66, %v62
    %v68 = vpop.permute.xlu0 %67
    %vm69 = vcmp.eq.s32.totalorder %v37, %v65
    %vm70 = vcmp.eq.s32.totalorder %v38, %v65
    %vm71 = vcmp.eq.s32.totalorder %v37, %v68
    %vm72 = vcmp.eq.s32.totalorder %v38, %v68
    %v73 = vsel %vm69, 1, 0
    %v74 = vsel %vm70, 1, 0
    %v75 = vsel %vm71, 1, 0
    %v76 = vsel %vm72, 1, 0
    %v77 = vcvt.s32.f32 %v73
    %v78 = vcvt.s32.f32 %v74
    %v79 = vcvt.s32.f32 %v75
    %v80 = vcvt.s32.f32 %v76
    %v81 = vadd.f32 %v55, %v77
    %v82 = vadd.f32 %v56, %v78
    %v83 = vadd.f32 %v57, %v79
    %v84 = vadd.f32 %v58, %v80
    %v85 = vld [vmem:[%s2] sm:$0xff]
    %v86 = vld [vmem:[%s2 + $0x8] sm:$0xff]
    %v87 = vld [vmem:[%s2 + $0x10] sm:$0xff]
    %v88 = vld [vmem:[%s2 + $0x18] sm:$0xff]
    %v89 = vld [vmem:[%s2 + $0x20] sm:$0xff]
    %v90 = vld [vmem:[%s2 + $0x28] sm:$0xff]
    %v91 = vld [vmem:[%s2 + $0x30] sm:$0xff]
    %v92 = vld [vmem:[%s2 + $0x38] sm:$0xff]
    %v93 = vld [vmem:[%s2 + $0x40] sm:$0xff]
    %v94 = vld [vmem:[%s2 + $0x48] sm:$0xff]
    %v95 = vld [vmem:[%s2 + $0x50] sm:$0xff]
    %v96 = vld [vmem:[%s2 + $0x58] sm:$0xff]
    %v97 = vld [vmem:[%s2 + $0x60] sm:$0xff]
    %v98 = vld [vmem:[%s2 + $0x68] sm:$0xff]
    %v99 = vld [vmem:[%s2 + $0x70] sm:$0xff]
    %v100 = vld [vmem:[%s2 + $0x78] sm:$0xff]
    %v101 = vld [vmem:[%s2 + $0x80] sm:$0xff]
    %v102 = vld [vmem:[%s2 + $0x88] sm:$0xff]
    %v103 = vld [vmem:[%s2 + $0x90] sm:$0xff]
    %v104 = vld [vmem:[%s2 + $0x98] sm:$0xff]
    %v105 = vld [vmem:[%s2 + $0xa0] sm:$0xff]
    %v106 = vld [vmem:[%s2 + $0xa8] sm:$0xff]
    %v107 = vld [vmem:[%s2 + $0xb0] sm:$0xff]
    %v108 = vld [vmem:[%s2 + $0xb8] sm:$0xff]
    %v109 = vld [vmem:[%s2 + $0xc0] sm:$0xff]
    %v110 = vld [vmem:[%s2 + $0xc8] sm:$0xff]
    %v111 = vld [vmem:[%s2 + $0xd0] sm:$0xff]
    %v112 = vld [vmem:[%s2 + $0xd8] sm:$0xff]
    %v113 = vld [vmem:[%s2 + $0xe0] sm:$0xff]
    %v114 = vld [vmem:[%s2 + $0xe8] sm:$0xff]
    %v115 = vld [vmem:[%s2 + $0xf0] sm:$0xff]
    %v116 = vld [vmem:[%s2 + $0xf8] sm:$0xff]
    %v117 = vld [vmem:[%s2 + $0x100] sm:$0xff]
    %v118 = vld [vmem:[%s2 + $0x108] sm:$0xff]
    %v119 = vld [vmem:[%s2 + $0x110] sm:$0xff]
    %v120 = vld [vmem:[%s2 + $0x118] sm:$0xff]
    %v121 = vld [vmem:[%s2 + $0x120] sm:$0xff]
    %v122 = vld [vmem:[%s2 + $0x128] sm:$0xff]
    %v123 = vld [vmem:[%s2 + $0x130] sm:$0xff]
    %v124 = vld [vmem:[%s2 + $0x138] sm:$0xff]
    %v125 = vld [vmem:[%s2 + $0x140] sm:$0xff]
    %v126 = vld [vmem:[%s2 + $0x148] sm:$0xff]
    %v127 = vld [vmem:[%s2 + $0x150] sm:$0xff]
    %v128 = vld [vmem:[%s2 + $0x158] sm:$0xff]
    %v129 = vld [vmem:[%s2 + $0x160] sm:$0xff]
    %v130 = vld [vmem:[%s2 + $0x168] sm:$0xff]
    %v131 = vld [vmem:[%s2 + $0x170] sm:$0xff]
    %v132 = vld [vmem:[%s2 + $0x178] sm:$0xff]
    %v133 = vld [vmem:[%s2 + $0x180] sm:$0xff]
    %v134 = vld [vmem:[%s2 + $0x188] sm:$0xff]
    %v135 = vld [vmem:[%s2 + $0x190] sm:$0xff]
    %v136 = vld [vmem:[%s2 + $0x198] sm:$0xff]
    %v137 = vld [vmem:[%s2 + $0x1a0] sm:$0xff]
    %v138 = vld [vmem:[%s2 + $0x1a8] sm:$0xff]
    %v139 = vld [vmem:[%s2 + $0x1b0] sm:$0xff]
    %v140 = vld [vmem:[%s2 + $0x1b8] sm:$0xff]
    %v141 = vld [vmem:[%s2 + $0x1c0] sm:$0xff]
    %v142 = vld [vmem:[%s2 + $0x1c8] sm:$0xff]
    %v143 = vld [vmem:[%s2 + $0x1d0] sm:$0xff]
    %v144 = vld [vmem:[%s2 + $0x1d8] sm:$0xff]
    %v145 = vld [vmem:[%s2 + $0x1e0] sm:$0xff]
    %v146 = vld [vmem:[%s2 + $0x1e8] sm:$0xff]
    %v147 = vld [vmem:[%s2 + $0x1f0] sm:$0xff]
    %v148 = vld [vmem:[%s2 + $0x1f8] sm:$0xff]
    %149 = vmatprep.subr.mxu0 %v116
    %150 = vmatpush1.msra.mxu0 %v115
    %151 = vmatprep.subr.mxu0 %v114
    %152 = vmatpush1.msra.mxu0 %v113
    %153 = vmatprep.subr.mxu0 %v112
    %154 = vmatpush1.msra.mxu0 %v111
    %155 = vmatprep.subr.mxu0 %v110
    %156 = vmatpush1.msra.mxu0 %v109
    %157 = vmatprep.subr.mxu0 %v108
    %158 = vmatpush1.msra.mxu0 %v107
    %159 = vmatprep.subr.mxu0 %v106
    %160 = vmatpush1.msra.mxu0 %v105
    %161 = vmatprep.subr.mxu0 %v104
    %162 = vmatpush1.msra.mxu0 %v103
    %163 = vmatprep.subr.mxu0 %v102
    %164 = vmatpush1.msra.mxu0 %v101
    %165 = vmatprep.subr.mxu0 %v100
    %166 = vmatpush1.msra.mxu0 %v99
    %167 = vmatprep.subr.mxu0 %v98
    %168 = vmatpush1.msra.mxu0 %v97
    %169 = vmatprep.subr.mxu0 %v96
    %170 = vmatpush1.msra.mxu0 %v95
    %171 = vmatprep.subr.mxu0 %v94
    %172 = vmatpush1.msra.mxu0 %v93
    %173 = vmatprep.subr.mxu0 %v92
    %174 = vmatpush1.msra.mxu0 %v91
    %175 = vmatprep.subr.mxu0 %v90
    %176 = vmatpush1.msra.mxu0 %v89
    %177 = vmatprep.subr.mxu0 %v88
    %178 = vmatpush1.msra.mxu0 %v87
    %179 = vmatprep.subr.mxu0 %v86
    %180 = vmatpush1.msra.mxu0 %v85
    %181 = vmatprep.subr.mxu0 %v148
    %182 = vmatpush2.msra.mxu0 %v147
    %183 = vmatprep.subr.mxu0 %v146
    %184 = vmatpush2.msra.mxu0 %v145
    %185 = vmatprep.subr.mxu0 %v144
    %186 = vmatpush2.msra.mxu0 %v143
    %187 = vmatprep.subr.mxu0 %v142
    %188 = vmatpush2.msra.mxu0 %v141
    %189 = vmatprep.subr.mxu0 %v140
    %190 = vmatpush2.msra.mxu0 %v139
    %191 = vmatprep.subr.mxu0 %v138
    %192 = vmatpush2.msra.mxu0 %v137
    %193 = vmatprep.subr.mxu0 %v136
    %194 = vmatpush2.msra.mxu0 %v135
    %195 = vmatprep.subr.mxu0 %v134
    %196 = vmatpush2.msra.mxu0 %v133
    %197 = vmatprep.subr.mxu0 %v132
    %198 = vmatpush2.msra.mxu0 %v131
    %199 = vmatprep.subr.mxu0 %v130
    %200 = vmatpush2.msra.mxu0 %v129
    %201 = vmatprep.subr.mxu0 %v128
    %202 = vmatpush2.msra.mxu0 %v127
    %203 = vmatprep.subr.mxu0 %v126
    %204 = vmatpush2.msra.mxu0 %v125
    %205 = vmatprep.subr.mxu0 %v124
    %206 = vmatpush2.msra.mxu0 %v123
    %207 = vmatprep.subr.mxu0 %v122
    %208 = vmatpush2.msra.mxu0 %v121
    %209 = vmatprep.subr.mxu0 %v120
    %210 = vmatpush2.msra.mxu0 %v119
    %211 = vmatprep.subr.mxu0 %v118
    %212 = vmatpush2.msra.mxu0 %v117
    %213 = vmatprep.mubr.f32.mxu0 %v82
    %214 = vmatmul.mubr.f32.gmra.mxu0 %v81
    %v215 = vpop.f32.mrf.mxu0
    %v216 = vadd.f32 0.0, %v215
    %v217 = vpop.f32.mrf.mxu0
    %v218 = vadd.f32 0.0, %v217
    %219 = vmatprep.mubr.f32.mxu0 %v84
    %220 = vmatmul.mubr.f32.gmra.mxu0 %v83
    %v221 = vpop.f32.mrf.mxu0
    %v222 = vadd.f32 0.0, %v221
    %v223 = vpop.f32.mrf.mxu0
    %v224 = vadd.f32 0.0, %v223
    %225 = vdwg.mxu0
    %v226 = vld [vmem:[%s3] sm:$0xff]
    %v227 = vld [vmem:[%s3 + $0x8] sm:$0xff]
    %v228 = vld [vmem:[%s3 + $0x10] sm:$0xff]
    %v229 = vld [vmem:[%s3 + $0x18] sm:$0xff]
    %v230 = vld [vmem:[%s3 + $0x20] sm:$0xff]
    %v231 = vld [vmem:[%s3 + $0x28] sm:$0xff]
    %v232 = vld [vmem:[%s3 + $0x30] sm:$0xff]
    %v233 = vld [vmem:[%s3 + $0x38] sm:$0xff]
    %v234 = vld [vmem:[%s3 + $0x40] sm:$0xff]
    %v235 = vld [vmem:[%s3 + $0x48] sm:$0xff]
    %v236 = vld [vmem:[%s3 + $0x50] sm:$0xff]
    %v237 = vld [vmem:[%s3 + $0x58] sm:$0xff]
    %v238 = vld [vmem:[%s3 + $0x60] sm:$0xff]
    %v239 = vld [vmem:[%s3 + $0x68] sm:$0xff]
    %v240 = vld [vmem:[%s3 + $0x70] sm:$0xff]
    %v241 = vld [vmem:[%s3 + $0x78] sm:$0xff]
    %v242 = vxor.u32 %v216, 2147483648
    %v243 = vxor.u32 %v218, 2147483648
    %v244 = vmul.f32 %v242, 1.442695
    %v245 = vpow.pop %v244
    %v246 = vmul.f32 %v243, 1.442695
    %v247 = vpow.pop %v246
    %v248 = vadd.f32 %v245, 1.0
    %v249 = vadd.f32 %v247, 1.0
    %v250 = vrcp.pop %v248
    %v251 = vmul.f32 1.0, %v250
    %v252 = vrcp.pop %v249
    %v253 = vmul.f32 1.0, %v252
    %v254 = vtanh.pop %v218
    %256 = vrot.lane.b32.xlu0 %v254, 64
    %v257 = vpop.permute.xlu0 %256
    %v259 = vmul.f32 %v251, %v257
    %v260 = vtanh.pop %v259
    %v261 = vmul.f32 %v253, %v260
    %vm262 = vcmask 523264
    %v264 = vsel %vm262, %v261, 0
    %266 = vmatprep.subr.mxu0 0.0
    %267 = vmatpush1.msra.mxu0 0.0
    %268 = vmatprep.subr.mxu0 0.0
    %269 = vmatpush1.msra.mxu0 0.0
    %270 = vmatprep.subr.mxu0 0.0
    %271 = vmatpush1.msra.mxu0 0.0
    %272 = vmatprep.subr.mxu0 0.0
    %273 = vmatpush1.msra.mxu0 0.0
    %274 = vmatprep.subr.mxu0 0.0
    %275 = vmatpush1.msra.mxu0 0.0
    %276 = vmatprep.subr.mxu0 0.0
    %277 = vmatpush1.msra.mxu0 0.0
    %278 = vmatprep.subr.mxu0 0.0
    %279 = vmatpush1.msra.mxu0 0.0
    %280 = vmatprep.subr.mxu0 0.0
    %281 = vmatpush1.msra.mxu0 0.0
    %282 = vmatprep.subr.mxu0 %v241
    %283 = vmatpush1.msra.mxu0 %v240
    %284 = vmatprep.subr.mxu0 %v239
    %285 = vmatpush1.msra.mxu0 %v238
    %286 = vmatprep.subr.mxu0 %v237
    %287 = vmatpush1.msra.mxu0 %v236
    %288 = vmatprep.subr.mxu0 %v235
    %289 = vmatpush1.msra.mxu0 %v234
    %290 = vmatprep.subr.mxu0 %v233
    %291 = vmatpush1.msra.mxu0 %v232
    %292 = vmatprep.subr.mxu0 %v231
    %293 = vmatpush1.msra.mxu0 %v230
    %294 = vmatprep.subr.mxu0 %v229
    %295 = vmatpush1.msra.mxu0 %v228
    %296 = vmatprep.subr.mxu0 %v227
    %297 = vmatpush1.msra.mxu0 %v226
    %298 = vmatprep.subr.mxu0 0.0
    %299 = vmatpush2.msra.mxu0 0.0
    %300 = vmatprep.subr.mxu0 0.0
    %301 = vmatpush2.msra.mxu0 0.0
    %302 = vmatprep.subr.mxu0 0.0
    %303 = vmatpush2.msra.mxu0 0.0
    %304 = vmatprep.subr.mxu0 0.0
    %305 = vmatpush2.msra.mxu0 0.0
    %306 = vmatprep.subr.mxu0 0.0
    %307 = vmatpush2.msra.mxu0 0.0
    %308 = vmatprep.subr.mxu0 0.0
    %309 = vmatpush2.msra.mxu0 0.0
    %310 = vmatprep.subr.mxu0 0.0
    %311 = vmatpush2.msra.mxu0 0.0
    %312 = vmatprep.subr.mxu0 0.0
    %313 = vmatpush2.msra.mxu0 0.0
    %314 = vmatprep.subr.mxu0 0.0
    %315 = vmatpush2.msra.mxu0 0.0
    %316 = vmatprep.subr.mxu0 0.0
    %317 = vmatpush2.msra.mxu0 0.0
    %318 = vmatprep.subr.mxu0 0.0
    %319 = vmatpush2.msra.mxu0 0.0
    %320 = vmatprep.subr.mxu0 0.0
    %321 = vmatpush2.msra.mxu0 0.0
    %322 = vmatprep.subr.mxu0 0.0
    %323 = vmatpush2.msra.mxu0 0.0
    %324 = vmatprep.subr.mxu0 0.0
    %325 = vmatpush2.msra.mxu0 0.0
    %326 = vmatprep.subr.mxu0 0.0
    %327 = vmatpush2.msra.mxu0 0.0
    %328 = vmatprep.subr.mxu0 0.0
    %329 = vmatpush2.msra.mxu0 0.0
    %330 = vmatprep.mubr.f32.mxu0 0.0
    %331 = vmatmul.mubr.f32.gmra.mxu0 %v264
    %v332 = vpop.f32.mrf.mxu0
    %v333 = vadd.f32 0.0, %v332
    %v334 = vpop.f32.mrf.mxu0
    %v335 = vadd.f32 0.0, %v334
    %336 = vdwg.mxu0
    %v339 = vrot.slane %v333, 6
    %v340 = vrot.slane %v335, 6
    %v343 = vadd.f32 %v216, %v339
    %v344 = vadd.f32 %v218, %v340
    %v345 = vxor.u32 %v343, 2147483648
    %v346 = vxor.u32 %v344, 2147483648
    %v347 = vmul.f32 %v345, 1.442695
    %v348 = vpow.pop %v347
    %v349 = vmul.f32 %v346, 1.442695
    %v350 = vpow.pop %v349
    %v351 = vadd.f32 %v348, 1.0
    %v352 = vadd.f32 %v350, 1.0
    %v353 = vrcp.pop %v351
    %v354 = vmul.f32 1.0, %v353
    %v355 = vrcp.pop %v352
    %v356 = vmul.f32 1.0, %v355
    %v357 = vtanh.pop %v344
    %v359 = vrot.slane %v259, 6
    %360 = vrot.lane.b32.xlu0 %v359, 64
    %v361 = vpop.permute.xlu0 %360
    %v363 = vmul.f32 %v354, %v361
    %365 = vrot.lane.b32.xlu0 %v357, 64
    %v366 = vpop.permute.xlu0 %365
    %v368 = vmul.f32 %v354, %v366
    %370 = vrot.lane.b32.xlu0 %v368, 64
    %v371 = vpop.permute.xlu0 %370
    %v373 = vadd.f32 %v363, %v371
    %v374 = vtanh.pop %v373
    %376 = vrot.lane.b32.xlu0 %v374, 64
    %v377 = vpop.permute.xlu0 %376
    %v379 = vmul.f32 %v356, %v377
    %v381 = vrot.slane %v379, 2
    %v382 = vsel %vm262, %v381, 0
    %384 = vmatprep.subr.mxu0 0.0
    %385 = vmatpush1.msra.mxu0 0.0
    %386 = vmatprep.subr.mxu0 0.0
    %387 = vmatpush1.msra.mxu0 0.0
    %388 = vmatprep.subr.mxu0 0.0
    %389 = vmatpush1.msra.mxu0 0.0
    %390 = vmatprep.subr.mxu0 0.0
    %391 = vmatpush1.msra.mxu0 0.0
    %392 = vmatprep.subr.mxu0 0.0
    %393 = vmatpush1.msra.mxu0 0.0
    %394 = vmatprep.subr.mxu0 0.0
    %395 = vmatpush1.msra.mxu0 0.0
    %396 = vmatprep.subr.mxu0 0.0
    %397 = vmatpush1.msra.mxu0 0.0
    %398 = vmatprep.subr.mxu0 0.0
    %399 = vmatpush1.msra.mxu0 0.0
    %400 = vmatprep.subr.mxu0 %v241
    %401 = vmatpush1.msra.mxu0 %v240
    %402 = vmatprep.subr.mxu0 %v239
    %403 = vmatpush1.msra.mxu0 %v238
    %404 = vmatprep.subr.mxu0 %v237
    %405 = vmatpush1.msra.mxu0 %v236
    %406 = vmatprep.subr.mxu0 %v235
    %407 = vmatpush1.msra.mxu0 %v234
    %408 = vmatprep.subr.mxu0 %v233
    %409 = vmatpush1.msra.mxu0 %v232
    %410 = vmatprep.subr.mxu0 %v231
    %411 = vmatpush1.msra.mxu0 %v230
    %412 = vmatprep.subr.mxu0 %v229
    %413 = vmatpush1.msra.mxu0 %v228
    %414 = vmatprep.subr.mxu0 %v227
    %415 = vmatpush1.msra.mxu0 %v226
    %416 = vmatprep.subr.mxu0 0.0
    %417 = vmatpush2.msra.mxu0 0.0
    %418 = vmatprep.subr.mxu0 0.0
    %419 = vmatpush2.msra.mxu0 0.0
    %420 = vmatprep.subr.mxu0 0.0
    %421 = vmatpush2.msra.mxu0 0.0
    %422 = vmatprep.subr.mxu0 0.0
    %423 = vmatpush2.msra.mxu0 0.0
    %424 = vmatprep.subr.mxu0 0.0
    %425 = vmatpush2.msra.mxu0 0.0
    %426 = vmatprep.subr.mxu0 0.0
    %427 = vmatpush2.msra.mxu0 0.0
    %428 = vmatprep.subr.mxu0 0.0
    %429 = vmatpush2.msra.mxu0 0.0
    %430 = vmatprep.subr.mxu0 0.0
    %431 = vmatpush2.msra.mxu0 0.0
    %432 = vmatprep.subr.mxu0 0.0
    %433 = vmatpush2.msra.mxu0 0.0
    %434 = vmatprep.subr.mxu0 0.0
    %435 = vmatpush2.msra.mxu0 0.0
    %436 = vmatprep.subr.mxu0 0.0
    %437 = vmatpush2.msra.mxu0 0.0
    %438 = vmatprep.subr.mxu0 0.0
    %439 = vmatpush2.msra.mxu0 0.0
    %440 = vmatprep.subr.mxu0 0.0
    %441 = vmatpush2.msra.mxu0 0.0
    %442 = vmatprep.subr.mxu0 0.0
    %443 = vmatpush2.msra.mxu0 0.0
    %444 = vmatprep.subr.mxu0 0.0
    %445 = vmatpush2.msra.mxu0 0.0
    %446 = vmatprep.subr.mxu0 0.0
    %447 = vmatpush2.msra.mxu0 0.0
    %448 = vmatprep.mubr.f32.mxu0 0.0
    %449 = vmatmul.mubr.f32.gmra.mxu0 %v382
    %v450 = vpop.f32.mrf.mxu0
    %v451 = vadd.f32 0.0, %v450
    %v452 = vpop.f32.mrf.mxu0
    %v453 = vadd.f32 0.0, %v452
    %454 = vdwg.mxu0
    %v457 = vrot.slane %v451, 4
    %v458 = vrot.slane %v453, 4
    %v461 = vadd.f32 %v216, %v457
    %v462 = vadd.f32 %v218, %v458
    %v463 = vxor.u32 %v461, 2147483648
    %v464 = vxor.u32 %v462, 2147483648
    %v465 = vmul.f32 %v463, 1.442695
    %v466 = vpow.pop %v465
    %v467 = vmul.f32 %v464, 1.442695
    %v468 = vpow.pop %v467
    %v469 = vadd.f32 %v466, 1.0
    %v470 = vadd.f32 %v468, 1.0
    %v471 = vrcp.pop %v469
    %v472 = vmul.f32 1.0, %v471
    %v473 = vrcp.pop %v470
    %v474 = vmul.f32 1.0, %v473
    %v475 = vtanh.pop %v462
    %v477 = vrot.slane %v373, 6
    %v479 = vmul.f32 %v472, %v477
    %481 = vrot.lane.b32.xlu0 %v475, 64
    %v482 = vpop.permute.xlu0 %481
    %v484 = vmul.f32 %v472, %v482
    %486 = vrot.lane.b32.xlu0 %v484, 64
    %v487 = vpop.permute.xlu0 %486
    %v489 = vadd.f32 %v479, %v487
    %v490 = vtanh.pop %v489
    %492 = vrot.lane.b32.xlu0 %v490, 64
    %v493 = vpop.permute.xlu0 %492
    %v495 = vmul.f32 %v474, %v493
    %v497 = vrot.slane %v495, 4
    %v498 = vsel %vm262, %v497, 0
    %500 = vmatprep.subr.mxu0 0.0
    %501 = vmatpush1.msra.mxu0 0.0
    %502 = vmatprep.subr.mxu0 0.0
    %503 = vmatpush1.msra.mxu0 0.0
    %504 = vmatprep.subr.mxu0 0.0
    %505 = vmatpush1.msra.mxu0 0.0
    %506 = vmatprep.subr.mxu0 0.0
    %507 = vmatpush1.msra.mxu0 0.0
    %508 = vmatprep.subr.mxu0 0.0
    %509 = vmatpush1.msra.mxu0 0.0
    %510 = vmatprep.subr.mxu0 0.0
    %511 = vmatpush1.msra.mxu0 0.0
    %512 = vmatprep.subr.mxu0 0.0
    %513 = vmatpush1.msra.mxu0 0.0
    %514 = vmatprep.subr.mxu0 0.0
    %515 = vmatpush1.msra.mxu0 0.0
    %516 = vmatprep.subr.mxu0 %v241
    %517 = vmatpush1.msra.mxu0 %v240
    %518 = vmatprep.subr.mxu0 %v239
    %519 = vmatpush1.msra.mxu0 %v238
    %520 = vmatprep.subr.mxu0 %v237
    %521 = vmatpush1.msra.mxu0 %v236
    %522 = vmatprep.subr.mxu0 %v235
    %523 = vmatpush1.msra.mxu0 %v234
    %524 = vmatprep.subr.mxu0 %v233
    %525 = vmatpush1.msra.mxu0 %v232
    %526 = vmatprep.subr.mxu0 %v231
    %527 = vmatpush1.msra.mxu0 %v230
    %528 = vmatprep.subr.mxu0 %v229
    %529 = vmatpush1.msra.mxu0 %v228
    %530 = vmatprep.subr.mxu0 %v227
    %531 = vmatpush1.msra.mxu0 %v226
    %532 = vmatprep.subr.mxu0 0.0
    %533 = vmatpush2.msra.mxu0 0.0
    %534 = vmatprep.subr.mxu0 0.0
    %535 = vmatpush2.msra.mxu0 0.0
    %536 = vmatprep.subr.mxu0 0.0
    %537 = vmatpush2.msra.mxu0 0.0
    %538 = vmatprep.subr.mxu0 0.0
    %539 = vmatpush2.msra.mxu0 0.0
    %540 = vmatprep.subr.mxu0 0.0
    %541 = vmatpush2.msra.mxu0 0.0
    %542 = vmatprep.subr.mxu0 0.0
    %543 = vmatpush2.msra.mxu0 0.0
    %544 = vmatprep.subr.mxu0 0.0
    %545 = vmatpush2.msra.mxu0 0.0
    %546 = vmatprep.subr.mxu0 0.0
    %547 = vmatpush2.msra.mxu0 0.0
    %548 = vmatprep.subr.mxu0 0.0
    %549 = vmatpush2.msra.mxu0 0.0
    %550 = vmatprep.subr.mxu0 0.0
    %551 = vmatpush2.msra.mxu0 0.0
    %552 = vmatprep.subr.mxu0 0.0
    %553 = vmatpush2.msra.mxu0 0.0
    %554 = vmatprep.subr.mxu0 0.0
    %555 = vmatpush2.msra.mxu0 0.0
    %556 = vmatprep.subr.mxu0 0.0
    %557 = vmatpush2.msra.mxu0 0.0
    %558 = vmatprep.subr.mxu0 0.0
    %559 = vmatpush2.msra.mxu0 0.0
    %560 = vmatprep.subr.mxu0 0.0
    %561 = vmatpush2.msra.mxu0 0.0
    %562 = vmatprep.subr.mxu0 0.0
    %563 = vmatpush2.msra.mxu0 0.0
    %564 = vmatprep.mubr.f32.mxu0 0.0
    %565 = vmatmul.mubr.f32.gmra.mxu0 %v498
    %v566 = vpop.f32.mrf.mxu0
    %v567 = vadd.f32 0.0, %v566
    %v568 = vpop.f32.mrf.mxu0
    %v569 = vadd.f32 0.0, %v568
    %570 = vdwg.mxu0
    %v573 = vrot.slane %v567, 2
    %v574 = vrot.slane %v569, 2
    %v577 = vadd.f32 %v216, %v573
    %v578 = vadd.f32 %v218, %v574
    %v579 = vxor.u32 %v577, 2147483648
    %v580 = vxor.u32 %v578, 2147483648
    %v581 = vmul.f32 %v579, 1.442695
    %v582 = vpow.pop %v581
    %v583 = vmul.f32 %v580, 1.442695
    %v584 = vpow.pop %v583
    %v585 = vadd.f32 %v582, 1.0
    %v586 = vadd.f32 %v584, 1.0
    %v587 = vrcp.pop %v585
    %v588 = vmul.f32 1.0, %v587
    %v589 = vrcp.pop %v586
    %v590 = vmul.f32 1.0, %v589
    %v591 = vtanh.pop %v578
    %v593 = vrot.slane %v489, 6
    %v595 = vmul.f32 %v588, %v593
    %597 = vrot.lane.b32.xlu0 %v591, 64
    %v598 = vpop.permute.xlu0 %597
    %v600 = vmul.f32 %v588, %v598
    %602 = vrot.lane.b32.xlu0 %v600, 64
    %v603 = vpop.permute.xlu0 %602
    %v605 = vadd.f32 %v595, %v603
    %v606 = vtanh.pop %v605
    %608 = vrot.lane.b32.xlu0 %v606, 64
    %v609 = vpop.permute.xlu0 %608
    %v611 = vmul.f32 %v590, %v609
    %v613 = vrot.slane %v611, 6
    %v614 = vsel %vm262, %v613, 0
    %616 = vmatprep.subr.mxu0 0.0
    %617 = vmatpush1.msra.mxu0 0.0
    %618 = vmatprep.subr.mxu0 0.0
    %619 = vmatpush1.msra.mxu0 0.0
    %620 = vmatprep.subr.mxu0 0.0
    %621 = vmatpush1.msra.mxu0 0.0
    %622 = vmatprep.subr.mxu0 0.0
    %623 = vmatpush1.msra.mxu0 0.0
    %624 = vmatprep.subr.mxu0 0.0
    %625 = vmatpush1.msra.mxu0 0.0
    %626 = vmatprep.subr.mxu0 0.0
    %627 = vmatpush1.msra.mxu0 0.0
    %628 = vmatprep.subr.mxu0 0.0
    %629 = vmatpush1.msra.mxu0 0.0
    %630 = vmatprep.subr.mxu0 0.0
    %631 = vmatpush1.msra.mxu0 0.0
    %632 = vmatprep.subr.mxu0 %v241
    %633 = vmatpush1.msra.mxu0 %v240
    %634 = vmatprep.subr.mxu0 %v239
    %635 = vmatpush1.msra.mxu0 %v238
    %636 = vmatprep.subr.mxu0 %v237
    %637 = vmatpush1.msra.mxu0 %v236
    %638 = vmatprep.subr.mxu0 %v235
    %639 = vmatpush1.msra.mxu0 %v234
    %640 = vmatprep.subr.mxu0 %v233
    %641 = vmatpush1.msra.mxu0 %v232
    %642 = vmatprep.subr.mxu0 %v231
    %643 = vmatpush1.msra.mxu0 %v230
    %644 = vmatprep.subr.mxu0 %v229
    %645 = vmatpush1.msra.mxu0 %v228
    %646 = vmatprep.subr.mxu0 %v227
    %647 = vmatpush1.msra.mxu0 %v226
    %648 = vmatprep.subr.mxu0 0.0
    %649 = vmatpush2.msra.mxu0 0.0
    %650 = vmatprep.subr.mxu0 0.0
    %651 = vmatpush2.msra.mxu0 0.0
    %652 = vmatprep.subr.mxu0 0.0
    %653 = vmatpush2.msra.mxu0 0.0
    %654 = vmatprep.subr.mxu0 0.0
    %655 = vmatpush2.msra.mxu0 0.0
    %656 = vmatprep.subr.mxu0 0.0
    %657 = vmatpush2.msra.mxu0 0.0
    %658 = vmatprep.subr.mxu0 0.0
    %659 = vmatpush2.msra.mxu0 0.0
    %660 = vmatprep.subr.mxu0 0.0
    %661 = vmatpush2.msra.mxu0 0.0
    %662 = vmatprep.subr.mxu0 0.0
    %663 = vmatpush2.msra.mxu0 0.0
    %664 = vmatprep.subr.mxu0 0.0
    %665 = vmatpush2.msra.mxu0 0.0
    %666 = vmatprep.subr.mxu0 0.0
    %667 = vmatpush2.msra.mxu0 0.0
    %668 = vmatprep.subr.mxu0 0.0
    %669 = vmatpush2.msra.mxu0 0.0
    %670 = vmatprep.subr.mxu0 0.0
    %671 = vmatpush2.msra.mxu0 0.0
    %672 = vmatprep.subr.mxu0 0.0
    %673 = vmatpush2.msra.mxu0 0.0
    %674 = vmatprep.subr.mxu0 0.0
    %675 = vmatpush2.msra.mxu0 0.0
    %676 = vmatprep.subr.mxu0 0.0
    %677 = vmatpush2.msra.mxu0 0.0
    %678 = vmatprep.subr.mxu0 0.0
    %679 = vmatpush2.msra.mxu0 0.0
    %680 = vmatprep.mubr.f32.mxu0 0.0
    %681 = vmatmul.mubr.f32.gmra.mxu0 %v614
    %v682 = vpop.f32.mrf.mxu0
    %v683 = vadd.f32 0.0, %v682
    %v684 = vpop.f32.mrf.mxu0
    %v685 = vadd.f32 0.0, %v684
    %686 = vdwg.mxu0
    %v687 = vadd.f32 %v222, %v683
    %v688 = vadd.f32 %v224, %v685
    %v689 = vxor.u32 %v687, 2147483648
    %v690 = vxor.u32 %v688, 2147483648
    %v691 = vmul.f32 %v689, 1.442695
    %v692 = vpow.pop %v691
    %v693 = vmul.f32 %v690, 1.442695
    %v694 = vpow.pop %v693
    %v695 = vadd.f32 %v692, 1.0
    %v696 = vadd.f32 %v694, 1.0
    %v697 = vrcp.pop %v695
    %v698 = vmul.f32 1.0, %v697
    %v699 = vrcp.pop %v696
    %v700 = vmul.f32 1.0, %v699
    %v701 = vtanh.pop %v688
    %v703 = vrot.slane %v605, 6
    %v705 = vmul.f32 %v698, %v703
    %707 = vrot.lane.b32.xlu0 %v701, 64
    %v708 = vpop.permute.xlu0 %707
    %v710 = vmul.f32 %v698, %v708
    %712 = vrot.lane.b32.xlu0 %v710, 64
    %v713 = vpop.permute.xlu0 %712
    %v715 = vadd.f32 %v705, %v713
    %v716 = vtanh.pop %v715
    %718 = vrot.lane.b32.xlu0 %v716, 64
    %v719 = vpop.permute.xlu0 %718
    %v721 = vmul.f32 %v700, %v719
    %v723 = vsel %vm262, %v721, 0
    %725 = vmatprep.subr.mxu0 0.0
    %726 = vmatpush1.msra.mxu0 0.0
    %727 = vmatprep.subr.mxu0 0.0
    %728 = vmatpush1.msra.mxu0 0.0
    %729 = vmatprep.subr.mxu0 0.0
    %730 = vmatpush1.msra.mxu0 0.0
    %731 = vmatprep.subr.mxu0 0.0
    %732 = vmatpush1.msra.mxu0 0.0
    %733 = vmatprep.subr.mxu0 0.0
    %734 = vmatpush1.msra.mxu0 0.0
    %735 = vmatprep.subr.mxu0 0.0
    %736 = vmatpush1.msra.mxu0 0.0
    %737 = vmatprep.subr.mxu0 0.0
    %738 = vmatpush1.msra.mxu0 0.0
    %739 = vmatprep.subr.mxu0 0.0
    %740 = vmatpush1.msra.mxu0 0.0
    %741 = vmatprep.subr.mxu0 %v241
    %742 = vmatpush1.msra.mxu0 %v240
    %743 = vmatprep.subr.mxu0 %v239
    %744 = vmatpush1.msra.mxu0 %v238
    %745 = vmatprep.subr.mxu0 %v237
    %746 = vmatpush1.msra.mxu0 %v236
    %747 = vmatprep.subr.mxu0 %v235
    %748 = vmatpush1.msra.mxu0 %v234
    %749 = vmatprep.subr.mxu0 %v233
    %750 = vmatpush1.msra.mxu0 %v232
    %751 = vmatprep.subr.mxu0 %v231
    %752 = vmatpush1.msra.mxu0 %v230
    %753 = vmatprep.subr.mxu0 %v229
    %754 = vmatpush1.msra.mxu0 %v228
    %755 = vmatprep.subr.mxu0 %v227
    %756 = vmatpush1.msra.mxu0 %v226
    %757 = vmatprep.subr.mxu0 0.0
    %758 = vmatpush2.msra.mxu0 0.0
    %759 = vmatprep.subr.mxu0 0.0
    %760 = vmatpush2.msra.mxu0 0.0
    %761 = vmatprep.subr.mxu0 0.0
    %762 = vmatpush2.msra.mxu0 0.0
    %763 = vmatprep.subr.mxu0 0.0
    %764 = vmatpush2.msra.mxu0 0.0
    %765 = vmatprep.subr.mxu0 0.0
    %766 = vmatpush2.msra.mxu0 0.0
    %767 = vmatprep.subr.mxu0 0.0
    %768 = vmatpush2.msra.mxu0 0.0
    %769 = vmatprep.subr.mxu0 0.0
    %770 = vmatpush2.msra.mxu0 0.0
    %771 = vmatprep.subr.mxu0 0.0
    %772 = vmatpush2.msra.mxu0 0.0
    %773 = vmatprep.subr.mxu0 0.0
    %774 = vmatpush2.msra.mxu0 0.0
    %775 = vmatprep.subr.mxu0 0.0
    %776 = vmatpush2.msra.mxu0 0.0
    %777 = vmatprep.subr.mxu0 0.0
    %778 = vmatpush2.msra.mxu0 0.0
    %779 = vmatprep.subr.mxu0 0.0
    %780 = vmatpush2.msra.mxu0 0.0
    %781 = vmatprep.subr.mxu0 0.0
    %782 = vmatpush2.msra.mxu0 0.0
    %783 = vmatprep.subr.mxu0 0.0
    %784 = vmatpush2.msra.mxu0 0.0
    %785 = vmatprep.subr.mxu0 0.0
    %786 = vmatpush2.msra.mxu0 0.0
    %787 = vmatprep.subr.mxu0 0.0
    %788 = vmatpush2.msra.mxu0 0.0
    %789 = vmatprep.mubr.f32.mxu0 0.0
    %790 = vmatmul.mubr.f32.gmra.mxu0 %v723
    %v791 = vpop.f32.mrf.mxu0
    %v792 = vadd.f32 0.0, %v791
    %v793 = vpop.f32.mrf.mxu0
    %v794 = vadd.f32 0.0, %v793
    %795 = vdwg.mxu0
    %v798 = vrot.slane %v792, 6
    %v799 = vrot.slane %v794, 6
    %v802 = vadd.f32 %v222, %v798
    %v803 = vadd.f32 %v224, %v799
    %v804 = vxor.u32 %v802, 2147483648
    %v805 = vxor.u32 %v803, 2147483648
    %v806 = vmul.f32 %v804, 1.442695
    %v807 = vpow.pop %v806
    %v808 = vmul.f32 %v805, 1.442695
    %v809 = vpow.pop %v808
    %v810 = vadd.f32 %v807, 1.0
    %v811 = vadd.f32 %v809, 1.0
    %v812 = vrcp.pop %v810
    %v813 = vmul.f32 1.0, %v812
    %v814 = vrcp.pop %v811
    %v815 = vmul.f32 1.0, %v814
    %v816 = vtanh.pop %v803
    %v818 = vrot.slane %v715, 6
    %v820 = vmul.f32 %v813, %v818
    %822 = vrot.lane.b32.xlu0 %v816, 64
    %v823 = vpop.permute.xlu0 %822
    %v825 = vmul.f32 %v813, %v823
    %827 = vrot.lane.b32.xlu0 %v825, 64
    %v828 = vpop.permute.xlu0 %827
    %v830 = vadd.f32 %v820, %v828
    %v831 = vtanh.pop %v830
    %833 = vrot.lane.b32.xlu0 %v831, 64
    %v834 = vpop.permute.xlu0 %833
    %v836 = vmul.f32 %v815, %v834
    %v838 = vrot.slane %v836, 2
    %v839 = vsel %vm262, %v838, 0
    %841 = vmatprep.subr.mxu0 0.0
    %842 = vmatpush1.msra.mxu0 0.0
    %843 = vmatprep.subr.mxu0 0.0
    %844 = vmatpush1.msra.mxu0 0.0
    %845 = vmatprep.subr.mxu0 0.0
    %846 = vmatpush1.msra.mxu0 0.0
    %847 = vmatprep.subr.mxu0 0.0
    %848 = vmatpush1.msra.mxu0 0.0
    %849 = vmatprep.subr.mxu0 0.0
    %850 = vmatpush1.msra.mxu0 0.0
    %851 = vmatprep.subr.mxu0 0.0
    %852 = vmatpush1.msra.mxu0 0.0
    %853 = vmatprep.subr.mxu0 0.0
    %854 = vmatpush1.msra.mxu0 0.0
    %855 = vmatprep.subr.mxu0 0.0
    %856 = vmatpush1.msra.mxu0 0.0
    %857 = vmatprep.subr.mxu0 %v241
    %858 = vmatpush1.msra.mxu0 %v240
    %859 = vmatprep.subr.mxu0 %v239
    %860 = vmatpush1.msra.mxu0 %v238
    %861 = vmatprep.subr.mxu0 %v237
    %862 = vmatpush1.msra.mxu0 %v236
    %863 = vmatprep.subr.mxu0 %v235
    %864 = vmatpush1.msra.mxu0 %v234
    %865 = vmatprep.subr.mxu0 %v233
    %866 = vmatpush1.msra.mxu0 %v232
    %867 = vmatprep.subr.mxu0 %v231
    %868 = vmatpush1.msra.mxu0 %v230
    %869 = vmatprep.subr.mxu0 %v229
    %870 = vmatpush1.msra.mxu0 %v228
    %871 = vmatprep.subr.mxu0 %v227
    %872 = vmatpush1.msra.mxu0 %v226
    %873 = vmatprep.subr.mxu0 0.0
    %874 = vmatpush2.msra.mxu0 0.0
    %875 = vmatprep.subr.mxu0 0.0
    %876 = vmatpush2.msra.mxu0 0.0
    %877 = vmatprep.subr.mxu0 0.0
    %878 = vmatpush2.msra.mxu0 0.0
    %879 = vmatprep.subr.mxu0 0.0
    %880 = vmatpush2.msra.mxu0 0.0
    %881 = vmatprep.subr.mxu0 0.0
    %882 = vmatpush2.msra.mxu0 0.0
    %883 = vmatprep.subr.mxu0 0.0
    %884 = vmatpush2.msra.mxu0 0.0
    %885 = vmatprep.subr.mxu0 0.0
    %886 = vmatpush2.msra.mxu0 0.0
    %887 = vmatprep.subr.mxu0 0.0
    %888 = vmatpush2.msra.mxu0 0.0
    %889 = vmatprep.subr.mxu0 0.0
    %890 = vmatpush2.msra.mxu0 0.0
    %891 = vmatprep.subr.mxu0 0.0
    %892 = vmatpush2.msra.mxu0 0.0
    %893 = vmatprep.subr.mxu0 0.0
    %894 = vmatpush2.msra.mxu0 0.0
    %895 = vmatprep.subr.mxu0 0.0
    %896 = vmatpush2.msra.mxu0 0.0
    %897 = vmatprep.subr.mxu0 0.0
    %898 = vmatpush2.msra.mxu0 0.0
    %899 = vmatprep.subr.mxu0 0.0
    %900 = vmatpush2.msra.mxu0 0.0
    %901 = vmatprep.subr.mxu0 0.0
    %902 = vmatpush2.msra.mxu0 0.0
    %903 = vmatprep.subr.mxu0 0.0
    %904 = vmatpush2.msra.mxu0 0.0
    %905 = vmatprep.mubr.f32.mxu0 0.0
    %906 = vmatmul.mubr.f32.gmra.mxu0 %v839
    %v907 = vpop.f32.mrf.mxu0
    %v908 = vadd.f32 0.0, %v907
    %v909 = vpop.f32.mrf.mxu0
    %v910 = vadd.f32 0.0, %v909
    %911 = vdwg.mxu0
    %v914 = vrot.slane %v908, 4
    %v915 = vrot.slane %v910, 4
    %v918 = vadd.f32 %v222, %v914
    %v919 = vadd.f32 %v224, %v915
    %v920 = vxor.u32 %v918, 2147483648
    %v921 = vxor.u32 %v919, 2147483648
    %v922 = vmul.f32 %v920, 1.442695
    %v923 = vpow.pop %v922
    %v924 = vmul.f32 %v921, 1.442695
    %v925 = vpow.pop %v924
    %v926 = vadd.f32 %v923, 1.0
    %v927 = vadd.f32 %v925, 1.0
    %v928 = vrcp.pop %v926
    %v929 = vmul.f32 1.0, %v928
    %v930 = vrcp.pop %v927
    %v931 = vmul.f32 1.0, %v930
    %v932 = vtanh.pop %v919
    %v934 = vrot.slane %v830, 6
    %v936 = vmul.f32 %v929, %v934
    %938 = vrot.lane.b32.xlu0 %v932, 64
    %v939 = vpop.permute.xlu0 %938
    %v941 = vmul.f32 %v929, %v939
    %943 = vrot.lane.b32.xlu0 %v941, 64
    %v944 = vpop.permute.xlu0 %943
    %v946 = vadd.f32 %v936, %v944
    %v947 = vtanh.pop %v946
    %949 = vrot.lane.b32.xlu0 %v947, 64
    %v950 = vpop.permute.xlu0 %949
    %v952 = vmul.f32 %v931, %v950
    %v954 = vrot.slane %v952, 4
    %v955 = vsel %vm262, %v954, 0
    %957 = vmatprep.subr.mxu0 0.0
    %958 = vmatpush1.msra.mxu0 0.0
    %959 = vmatprep.subr.mxu0 0.0
    %960 = vmatpush1.msra.mxu0 0.0
    %961 = vmatprep.subr.mxu0 0.0
    %962 = vmatpush1.msra.mxu0 0.0
    %963 = vmatprep.subr.mxu0 0.0
    %964 = vmatpush1.msra.mxu0 0.0
    %965 = vmatprep.subr.mxu0 0.0
    %966 = vmatpush1.msra.mxu0 0.0
    %967 = vmatprep.subr.mxu0 0.0
    %968 = vmatpush1.msra.mxu0 0.0
    %969 = vmatprep.subr.mxu0 0.0
    %970 = vmatpush1.msra.mxu0 0.0
    %971 = vmatprep.subr.mxu0 0.0
    %972 = vmatpush1.msra.mxu0 0.0
    %973 = vmatprep.subr.mxu0 %v241
    %974 = vmatpush1.msra.mxu0 %v240
    %975 = vmatprep.subr.mxu0 %v239
    %976 = vmatpush1.msra.mxu0 %v238
    %977 = vmatprep.subr.mxu0 %v237
    %978 = vmatpush1.msra.mxu0 %v236
    %979 = vmatprep.subr.mxu0 %v235
    %980 = vmatpush1.msra.mxu0 %v234
    %981 = vmatprep.subr.mxu0 %v233
    %982 = vmatpush1.msra.mxu0 %v232
    %983 = vmatprep.subr.mxu0 %v231
    %984 = vmatpush1.msra.mxu0 %v230
    %985 = vmatprep.subr.mxu0 %v229
    %986 = vmatpush1.msra.mxu0 %v228
    %987 = vmatprep.subr.mxu0 %v227
    %988 = vmatpush1.msra.mxu0 %v226
    %989 = vmatprep.subr.mxu0 0.0
    %990 = vmatpush2.msra.mxu0 0.0
    %991 = vmatprep.subr.mxu0 0.0
    %992 = vmatpush2.msra.mxu0 0.0
    %993 = vmatprep.subr.mxu0 0.0
    %994 = vmatpush2.msra.mxu0 0.0
    %995 = vmatprep.subr.mxu0 0.0
    %996 = vmatpush2.msra.mxu0 0.0
    %997 = vmatprep.subr.mxu0 0.0
    %998 = vmatpush2.msra.mxu0 0.0
    %999 = vmatprep.subr.mxu0 0.0
    %1000 = vmatpush2.msra.mxu0 0.0
    %1001 = vmatprep.subr.mxu0 0.0
    %1002 = vmatpush2.msra.mxu0 0.0
    %1003 = vmatprep.subr.mxu0 0.0
    %1004 = vmatpush2.msra.mxu0 0.0
    %1005 = vmatprep.subr.mxu0 0.0
    %1006 = vmatpush2.msra.mxu0 0.0
    %1007 = vmatprep.subr.mxu0 0.0
    %1008 = vmatpush2.msra.mxu0 0.0
    %1009 = vmatprep.subr.mxu0 0.0
    %1010 = vmatpush2.msra.mxu0 0.0
    %1011 = vmatprep.subr.mxu0 0.0
    %1012 = vmatpush2.msra.mxu0 0.0
    %1013 = vmatprep.subr.mxu0 0.0
    %1014 = vmatpush2.msra.mxu0 0.0
    %1015 = vmatprep.subr.mxu0 0.0
    %1016 = vmatpush2.msra.mxu0 0.0
    %1017 = vmatprep.subr.mxu0 0.0
    %1018 = vmatpush2.msra.mxu0 0.0
    %1019 = vmatprep.subr.mxu0 0.0
    %1020 = vmatpush2.msra.mxu0 0.0
    %1021 = vmatprep.mubr.f32.mxu0 0.0
    %1022 = vmatmul.mubr.f32.gmra.mxu0 %v955
    %v1023 = vpop.f32.mrf.mxu0
    %v1024 = vadd.f32 0.0, %v1023
    %v1025 = vpop.f32.mrf.mxu0
    %v1026 = vadd.f32 0.0, %v1025
    %1027 = vdwg.mxu0
    %v1030 = vrot.slane %v1024, 2
    %v1031 = vrot.slane %v1026, 2
    %v1034 = vadd.f32 %v222, %v1030
    %v1035 = vadd.f32 %v224, %v1031
    %v1036 = vxor.u32 %v1034, 2147483648
    %v1037 = vxor.u32 %v1035, 2147483648
    %v1038 = vmul.f32 %v1036, 1.442695
    %v1039 = vpow.pop %v1038
    %v1040 = vmul.f32 %v1037, 1.442695
    %v1041 = vpow.pop %v1040
    %v1042 = vadd.f32 %v1039, 1.0
    %v1043 = vadd.f32 %v1041, 1.0
    %v1044 = vrcp.pop %v1042
    %v1045 = vmul.f32 1.0, %v1044
    %v1046 = vrcp.pop %v1043
    %v1047 = vmul.f32 1.0, %v1046
    %v1048 = vtanh.pop %v1035
    %v1050 = vrot.slane %v946, 6
    %v1052 = vmul.f32 %v1045, %v1050
    %1054 = vrot.lane.b32.xlu0 %v1048, 64
    %v1055 = vpop.permute.xlu0 %1054
    %v1057 = vmul.f32 %v1045, %v1055
    %1059 = vrot.lane.b32.xlu0 %v1057, 64
    %v1060 = vpop.permute.xlu0 %1059
    %v1062 = vadd.f32 %v1052, %v1060
    %v1063 = vtanh.pop %v1062
    %1065 = vrot.lane.b32.xlu0 %v1063, 64
    %v1066 = vpop.permute.xlu0 %1065
    %v1068 = vmul.f32 %v1047, %v1066
    %1069 = vrot.lane.b32.xlu0 %v381, 64
    %v1070 = vpop.permute.xlu0 %1069
    %1073 = vrot.lane.b32.xlu0 %v613, 64
    %v1074 = vpop.permute.xlu0 %1073
    %1076 = vrot.lane.b32.xlu0 %v838, 64
    %v1077 = vpop.permute.xlu0 %1076
    %v1081 = vrot.slane %v1068, 6
    %1082 = vrot.lane.b32.xlu0 %v1081, 64
    %v1083 = vpop.permute.xlu0 %1082
    %v1085 = vsel %vm262, %v261, %v1070
    %v1086 = vsel %vm262, %v497, %v1074
    %v1087 = vsel %vm262, %v721, %v1077
    %v1088 = vsel %vm262, %v954, %v1083
    %v1089 = vld [vmem:[%s4] sm:$0xff]
    %v1090 = vld [vmem:[%s4 + $0x8] sm:$0xff]
    %v1091 = vld [vmem:[%s4 + $0x10] sm:$0xff]
    %v1092 = vld [vmem:[%s4 + $0x18] sm:$0xff]
    %v1093 = vld [vmem:[%s4 + $0x20] sm:$0xff]
    %v1094 = vld [vmem:[%s4 + $0x28] sm:$0xff]
    %v1095 = vld [vmem:[%s4 + $0x30] sm:$0xff]
    %v1096 = vld [vmem:[%s4 + $0x38] sm:$0xff]
    %v1097 = vld [vmem:[%s4 + $0x40] sm:$0xff]
    %v1098 = vld [vmem:[%s4 + $0x48] sm:$0xff]
    %v1099 = vld [vmem:[%s4 + $0x50] sm:$0xff]
    %v1100 = vld [vmem:[%s4 + $0x58] sm:$0xff]
    %v1101 = vld [vmem:[%s4 + $0x60] sm:$0xff]
    %v1102 = vld [vmem:[%s4 + $0x68] sm:$0xff]
    %v1103 = vld [vmem:[%s4 + $0x70] sm:$0xff]
    %v1104 = vld [vmem:[%s4 + $0x78] sm:$0xff]
    %v1105 = vld [vmem:[%s4 + $0x80] sm:$0xff]
    %v1106 = vld [vmem:[%s4 + $0x88] sm:$0xff]
    %v1107 = vld [vmem:[%s4 + $0x90] sm:$0xff]
    %v1108 = vld [vmem:[%s4 + $0x98] sm:$0xff]
    %v1109 = vld [vmem:[%s4 + $0xa0] sm:$0xff]
    %v1110 = vld [vmem:[%s4 + $0xa8] sm:$0xff]
    %v1111 = vld [vmem:[%s4 + $0xb0] sm:$0xff]
    %v1112 = vld [vmem:[%s4 + $0xb8] sm:$0xff]
    %v1113 = vld [vmem:[%s4 + $0xc0] sm:$0xff]
    %v1114 = vld [vmem:[%s4 + $0xc8] sm:$0xff]
    %v1115 = vld [vmem:[%s4 + $0xd0] sm:$0xff]
    %v1116 = vld [vmem:[%s4 + $0xd8] sm:$0xff]
    %v1117 = vld [vmem:[%s4 + $0xe0] sm:$0xff]
    %v1118 = vld [vmem:[%s4 + $0xe8] sm:$0xff]
    %v1119 = vld [vmem:[%s4 + $0xf0] sm:$0xff]
    %v1120 = vld [vmem:[%s4 + $0xf8] sm:$0xff]
    %v1121 = vld [vmem:[%s4 + $0x100] sm:$0xff]
    %v1122 = vld [vmem:[%s4 + $0x108] sm:$0xff]
    %v1123 = vld [vmem:[%s4 + $0x110] sm:$0xff]
    %v1124 = vld [vmem:[%s4 + $0x118] sm:$0xff]
    %v1125 = vld [vmem:[%s4 + $0x120] sm:$0xff]
    %v1126 = vld [vmem:[%s4 + $0x128] sm:$0xff]
    %v1127 = vld [vmem:[%s4 + $0x130] sm:$0xff]
    %v1128 = vld [vmem:[%s4 + $0x138] sm:$0xff]
    %v1129 = vld [vmem:[%s4 + $0x140] sm:$0xff]
    %v1130 = vld [vmem:[%s4 + $0x148] sm:$0xff]
    %v1131 = vld [vmem:[%s4 + $0x150] sm:$0xff]
    %v1132 = vld [vmem:[%s4 + $0x158] sm:$0xff]
    %v1133 = vld [vmem:[%s4 + $0x160] sm:$0xff]
    %v1134 = vld [vmem:[%s4 + $0x168] sm:$0xff]
    %v1135 = vld [vmem:[%s4 + $0x170] sm:$0xff]
    %v1136 = vld [vmem:[%s4 + $0x178] sm:$0xff]
    %v1137 = vld [vmem:[%s4 + $0x180] sm:$0xff]
    %v1138 = vld [vmem:[%s4 + $0x188] sm:$0xff]
    %v1139 = vld [vmem:[%s4 + $0x190] sm:$0xff]
    %v1140 = vld [vmem:[%s4 + $0x198] sm:$0xff]
    %v1141 = vld [vmem:[%s4 + $0x1a0] sm:$0xff]
    %v1142 = vld [vmem:[%s4 + $0x1a8] sm:$0xff]
    %v1143 = vld [vmem:[%s4 + $0x1b0] sm:$0xff]
    %v1144 = vld [vmem:[%s4 + $0x1b8] sm:$0xff]
    %v1145 = vld [vmem:[%s4 + $0x1c0] sm:$0xff]
    %v1146 = vld [vmem:[%s4 + $0x1c8] sm:$0xff]
    %v1147 = vld [vmem:[%s4 + $0x1d0] sm:$0xff]
    %v1148 = vld [vmem:[%s4 + $0x1d8] sm:$0xff]
    %v1149 = vld [vmem:[%s4 + $0x1e0] sm:$0xff]
    %v1150 = vld [vmem:[%s4 + $0x1e8] sm:$0xff]
    %v1151 = vld [vmem:[%s4 + $0x1f0] sm:$0xff]
    %v1152 = vld [vmem:[%s4 + $0x1f8] sm:$0xff]
    %v1153 = vld [vmem:[%s5] sm:$0x1]
    %v1155 = vlaneseq
    %v1156 = vshrl.u32 %v1155, 7
    %v1157 = vsub.s32 0, %v1156
    %v1158 = vrot.slane %v1153, %v1157
    %1160 = vmatprep.subr.mxu0 0.0
    %1161 = vmatpush1.msra.mxu0 %v1104
    %1162 = vmatprep.subr.mxu0 0.0
    %1163 = vmatpush1.msra.mxu0 %v1103
    %1164 = vmatprep.subr.mxu0 0.0
    %1165 = vmatpush1.msra.mxu0 %v1102
    %1166 = vmatprep.subr.mxu0 0.0
    %1167 = vmatpush1.msra.mxu0 %v1101
    %1168 = vmatprep.subr.mxu0 0.0
    %1169 = vmatpush1.msra.mxu0 %v1100
    %1170 = vmatprep.subr.mxu0 0.0
    %1171 = vmatpush1.msra.mxu0 %v1099
    %1172 = vmatprep.subr.mxu0 0.0
    %1173 = vmatpush1.msra.mxu0 %v1098
    %1174 = vmatprep.subr.mxu0 0.0
    %1175 = vmatpush1.msra.mxu0 %v1097
    %1176 = vmatprep.subr.mxu0 0.0
    %1177 = vmatpush1.msra.mxu0 %v1096
    %1178 = vmatprep.subr.mxu0 0.0
    %1179 = vmatpush1.msra.mxu0 %v1095
    %1180 = vmatprep.subr.mxu0 0.0
    %1181 = vmatpush1.msra.mxu0 %v1094
    %1182 = vmatprep.subr.mxu0 0.0
    %1183 = vmatpush1.msra.mxu0 %v1093
    %1184 = vmatprep.subr.mxu0 0.0
    %1185 = vmatpush1.msra.mxu0 %v1092
    %1186 = vmatprep.subr.mxu0 0.0
    %1187 = vmatpush1.msra.mxu0 %v1091
    %1188 = vmatprep.subr.mxu0 0.0
    %1189 = vmatpush1.msra.mxu0 %v1090
    %1190 = vmatprep.subr.mxu0 0.0
    %1191 = vmatpush1.msra.mxu0 %v1089
    %1192 = vmatprep.subr.mxu0 0.0
    %1193 = vmatpush2.msra.mxu0 %v1120
    %1194 = vmatprep.subr.mxu0 0.0
    %1195 = vmatpush2.msra.mxu0 %v1119
    %1196 = vmatprep.subr.mxu0 0.0
    %1197 = vmatpush2.msra.mxu0 %v1118
    %1198 = vmatprep.subr.mxu0 0.0
    %1199 = vmatpush2.msra.mxu0 %v1117
    %1200 = vmatprep.subr.mxu0 0.0
    %1201 = vmatpush2.msra.mxu0 %v1116
    %1202 = vmatprep.subr.mxu0 0.0
    %1203 = vmatpush2.msra.mxu0 %v1115
    %1204 = vmatprep.subr.mxu0 0.0
    %1205 = vmatpush2.msra.mxu0 %v1114
    %1206 = vmatprep.subr.mxu0 0.0
    %1207 = vmatpush2.msra.mxu0 %v1113
    %1208 = vmatprep.subr.mxu0 0.0
    %1209 = vmatpush2.msra.mxu0 %v1112
    %1210 = vmatprep.subr.mxu0 0.0
    %1211 = vmatpush2.msra.mxu0 %v1111
    %1212 = vmatprep.subr.mxu0 0.0
    %1213 = vmatpush2.msra.mxu0 %v1110
    %1214 = vmatprep.subr.mxu0 0.0
    %1215 = vmatpush2.msra.mxu0 %v1109
    %1216 = vmatprep.subr.mxu0 0.0
    %1217 = vmatpush2.msra.mxu0 %v1108
    %1218 = vmatprep.subr.mxu0 0.0
    %1219 = vmatpush2.msra.mxu0 %v1107
    %1220 = vmatprep.subr.mxu0 0.0
    %1221 = vmatpush2.msra.mxu0 %v1106
    %1222 = vmatprep.subr.mxu0 0.0
    %1223 = vmatpush2.msra.mxu0 %v1105
    %1224 = vmatprep.mubr.f32.mxu0 %v1086
    %1225 = vmatmul.mubr.f32.gmra.mxu0 %v1085
    %v1226 = vpop.f32.mrf.mxu0
    %v1227 = vadd.f32 %v1158, %v1226
    %v1228 = vpop.f32.mrf.mxu0
    %1229 = vdwg.mxu0
    %1230 = vmatprep.subr.mxu0 0.0
    %1231 = vmatpush1.msra.mxu0 %v1136
    %1232 = vmatprep.subr.mxu0 0.0
    %1233 = vmatpush1.msra.mxu0 %v1135
    %1234 = vmatprep.subr.mxu0 0.0
    %1235 = vmatpush1.msra.mxu0 %v1134
    %1236 = vmatprep.subr.mxu0 0.0
    %1237 = vmatpush1.msra.mxu0 %v1133
    %1238 = vmatprep.subr.mxu0 0.0
    %1239 = vmatpush1.msra.mxu0 %v1132
    %1240 = vmatprep.subr.mxu0 0.0
    %1241 = vmatpush1.msra.mxu0 %v1131
    %1242 = vmatprep.subr.mxu0 0.0
    %1243 = vmatpush1.msra.mxu0 %v1130
    %1244 = vmatprep.subr.mxu0 0.0
    %1245 = vmatpush1.msra.mxu0 %v1129
    %1246 = vmatprep.subr.mxu0 0.0
    %1247 = vmatpush1.msra.mxu0 %v1128
    %1248 = vmatprep.subr.mxu0 0.0
    %1249 = vmatpush1.msra.mxu0 %v1127
    %1250 = vmatprep.subr.mxu0 0.0
    %1251 = vmatpush1.msra.mxu0 %v1126
    %1252 = vmatprep.subr.mxu0 0.0
    %1253 = vmatpush1.msra.mxu0 %v1125
    %1254 = vmatprep.subr.mxu0 0.0
    %1255 = vmatpush1.msra.mxu0 %v1124
    %1256 = vmatprep.subr.mxu0 0.0
    %1257 = vmatpush1.msra.mxu0 %v1123
    %1258 = vmatprep.subr.mxu0 0.0
    %1259 = vmatpush1.msra.mxu0 %v1122
    %1260 = vmatprep.subr.mxu0 0.0
    %1261 = vmatpush1.msra.mxu0 %v1121
    %1262 = vmatprep.subr.mxu0 0.0
    %1263 = vmatpush2.msra.mxu0 %v1152
    %1264 = vmatprep.subr.mxu0 0.0
    %1265 = vmatpush2.msra.mxu0 %v1151
    %1266 = vmatprep.subr.mxu0 0.0
    %1267 = vmatpush2.msra.mxu0 %v1150
    %1268 = vmatprep.subr.mxu0 0.0
    %1269 = vmatpush2.msra.mxu0 %v1149
    %1270 = vmatprep.subr.mxu0 0.0
    %1271 = vmatpush2.msra.mxu0 %v1148
    %1272 = vmatprep.subr.mxu0 0.0
    %1273 = vmatpush2.msra.mxu0 %v1147
    %1274 = vmatprep.subr.mxu0 0.0
    %1275 = vmatpush2.msra.mxu0 %v1146
    %1276 = vmatprep.subr.mxu0 0.0
    %1277 = vmatpush2.msra.mxu0 %v1145
    %1278 = vmatprep.subr.mxu0 0.0
    %1279 = vmatpush2.msra.mxu0 %v1144
    %1280 = vmatprep.subr.mxu0 0.0
    %1281 = vmatpush2.msra.mxu0 %v1143
    %1282 = vmatprep.subr.mxu0 0.0
    %1283 = vmatpush2.msra.mxu0 %v1142
    %1284 = vmatprep.subr.mxu0 0.0
    %1285 = vmatpush2.msra.mxu0 %v1141
    %1286 = vmatprep.subr.mxu0 0.0
    %1287 = vmatpush2.msra.mxu0 %v1140
    %1288 = vmatprep.subr.mxu0 0.0
    %1289 = vmatpush2.msra.mxu0 %v1139
    %1290 = vmatprep.subr.mxu0 0.0
    %1291 = vmatpush2.msra.mxu0 %v1138
    %1292 = vmatprep.subr.mxu0 0.0
    %1293 = vmatpush2.msra.mxu0 %v1137
    %1294 = vmatprep.mubr.f32.mxu0 %v1088
    %1295 = vmatmul.mubr.f32.gmra.mxu0 %v1087
    %v1296 = vpop.f32.mrf.mxu0
    %v1297 = vadd.f32 %v1227, %v1296
    %v1298 = vpop.f32.mrf.mxu0
    %1299 = vdwg.mxu0
    %v1300 = vmax.f32 %v1297, 0.0
    %v1301 = vld [vmem:[%s6] sm:$0xff]
    %v1302 = vld [vmem:[%s6 + $0x8] sm:$0xff]
    %v1303 = vld [vmem:[%s7] sm:$0x1]
    %v1305 = vlaneseq
    %v1306 = vshrl.u32 %v1305, 7
    %v1307 = vsub.s32 0, %v1306
    %v1308 = vrot.slane %v1303, %v1307
    %vm1310 = vcmask 130048
    %v1312 = vsel %vm1310, %v1300, 0
    %1314 = vmatprep.subr.mxu0 0.0
    %1315 = vmatpush1.msra.mxu0 0.0
    %1316 = vmatprep.subr.mxu0 0.0
    %1317 = vmatpush1.msra.mxu0 0.0
    %1318 = vmatprep.subr.mxu0 0.0
    %1319 = vmatpush1.msra.mxu0 0.0
    %1320 = vmatprep.subr.mxu0 0.0
    %1321 = vmatpush1.msra.mxu0 0.0
    %1322 = vmatprep.subr.mxu0 0.0
    %1323 = vmatpush1.msra.mxu0 0.0
    %1324 = vmatprep.subr.mxu0 0.0
    %1325 = vmatpush1.msra.mxu0 0.0
    %1326 = vmatprep.subr.mxu0 0.0
    %1327 = vmatpush1.msra.mxu0 0.0
    %1328 = vmatprep.subr.mxu0 0.0
    %1329 = vmatpush1.msra.mxu0 0.0
    %1330 = vmatprep.subr.mxu0 0.0
    %1331 = vmatpush1.msra.mxu0 0.0
    %1332 = vmatprep.subr.mxu0 0.0
    %1333 = vmatpush1.msra.mxu0 0.0
    %1334 = vmatprep.subr.mxu0 0.0
    %1335 = vmatpush1.msra.mxu0 0.0
    %1336 = vmatprep.subr.mxu0 0.0
    %1337 = vmatpush1.msra.mxu0 0.0
    %1338 = vmatprep.subr.mxu0 0.0
    %1339 = vmatpush1.msra.mxu0 0.0
    %1340 = vmatprep.subr.mxu0 0.0
    %1341 = vmatpush1.msra.mxu0 0.0
    %1342 = vmatprep.subr.mxu0 0.0
    %1343 = vmatpush1.msra.mxu0 %v1302
    %1344 = vmatprep.subr.mxu0 0.0
    %1345 = vmatpush1.msra.mxu0 %v1301
    %1346 = vmatprep.subr.mxu0 0.0
    %1347 = vmatpush2.msra.mxu0 0.0
    %1348 = vmatprep.subr.mxu0 0.0
    %1349 = vmatpush2.msra.mxu0 0.0
    %1350 = vmatprep.subr.mxu0 0.0
    %1351 = vmatpush2.msra.mxu0 0.0
    %1352 = vmatprep.subr.mxu0 0.0
    %1353 = vmatpush2.msra.mxu0 0.0
    %1354 = vmatprep.subr.mxu0 0.0
    %1355 = vmatpush2.msra.mxu0 0.0
    %1356 = vmatprep.subr.mxu0 0.0
    %1357 = vmatpush2.msra.mxu0 0.0
    %1358 = vmatprep.subr.mxu0 0.0
    %1359 = vmatpush2.msra.mxu0 0.0
    %1360 = vmatprep.subr.mxu0 0.0
    %1361 = vmatpush2.msra.mxu0 0.0
    %1362 = vmatprep.subr.mxu0 0.0
    %1363 = vmatpush2.msra.mxu0 0.0
    %1364 = vmatprep.subr.mxu0 0.0
    %1365 = vmatpush2.msra.mxu0 0.0
    %1366 = vmatprep.subr.mxu0 0.0
    %1367 = vmatpush2.msra.mxu0 0.0
    %1368 = vmatprep.subr.mxu0 0.0
    %1369 = vmatpush2.msra.mxu0 0.0
    %1370 = vmatprep.subr.mxu0 0.0
    %1371 = vmatpush2.msra.mxu0 0.0
    %1372 = vmatprep.subr.mxu0 0.0
    %1373 = vmatpush2.msra.mxu0 0.0
    %1374 = vmatprep.subr.mxu0 0.0
    %1375 = vmatpush2.msra.mxu0 0.0
    %1376 = vmatprep.subr.mxu0 0.0
    %1377 = vmatpush2.msra.mxu0 0.0
    %1378 = vmatprep.mubr.f32.mxu0 0.0
    %1379 = vmatmul.mubr.f32.gmra.mxu0 %v1312
    %v1380 = vpop.f32.mrf.mxu0
    %v1381 = vadd.f32 %v1308, %v1380
    %v1382 = vpop.f32.mrf.mxu0
    %1383 = vdwg.mxu0
    %v1384 = vtanh.pop %v1381
    %v1385 = vld [vmem:[%s8] sm:$0xff]
    %v1386 = vld [vmem:[%s9] sm:$0x1]
    %v1388 = vlaneseq
    %v1389 = vshrl.u32 %v1388, 7
    %v1390 = vsub.s32 0, %v1389
    %v1391 = vrot.slane %v1386, %v1390
    %vm1393 = vcmask 64512
    %v1395 = vsel %vm1393, %v1384, 0
    %1397 = vmatprep.subr.mxu0 0.0
    %1398 = vmatpush1.msra.mxu0 0.0
    %1399 = vmatprep.subr.mxu0 0.0
    %1400 = vmatpush1.msra.mxu0 0.0
    %1401 = vmatprep.subr.mxu0 0.0
    %1402 = vmatpush1.msra.mxu0 0.0
    %1403 = vmatprep.subr.mxu0 0.0
    %1404 = vmatpush1.msra.mxu0 0.0
    %1405 = vmatprep.subr.mxu0 0.0
    %1406 = vmatpush1.msra.mxu0 0.0
    %1407 = vmatprep.subr.mxu0 0.0
    %1408 = vmatpush1.msra.mxu0 0.0
    %1409 = vmatprep.subr.mxu0 0.0
    %1410 = vmatpush1.msra.mxu0 0.0
    %1411 = vmatprep.subr.mxu0 0.0
    %1412 = vmatpush1.msra.mxu0 0.0
    %1413 = vmatprep.subr.mxu0 0.0
    %1414 = vmatpush1.msra.mxu0 0.0
    %1415 = vmatprep.subr.mxu0 0.0
    %1416 = vmatpush1.msra.mxu0 0.0
    %1417 = vmatprep.subr.mxu0 0.0
    %1418 = vmatpush1.msra.mxu0 0.0
    %1419 = vmatprep.subr.mxu0 0.0
    %1420 = vmatpush1.msra.mxu0 0.0
    %1421 = vmatprep.subr.mxu0 0.0
    %1422 = vmatpush1.msra.mxu0 0.0
    %1423 = vmatprep.subr.mxu0 0.0
    %1424 = vmatpush1.msra.mxu0 0.0
    %1425 = vmatprep.subr.mxu0 0.0
    %1426 = vmatpush1.msra.mxu0 0.0
    %1427 = vmatprep.subr.mxu0 0.0
    %1428 = vmatpush1.msra.mxu0 %v1385
    %1429 = vmatprep.subr.mxu0 0.0
    %1430 = vmatpush2.msra.mxu0 0.0
    %1431 = vmatprep.subr.mxu0 0.0
    %1432 = vmatpush2.msra.mxu0 0.0
    %1433 = vmatprep.subr.mxu0 0.0
    %1434 = vmatpush2.msra.mxu0 0.0
    %1435 = vmatprep.subr.mxu0 0.0
    %1436 = vmatpush2.msra.mxu0 0.0
    %1437 = vmatprep.subr.mxu0 0.0
    %1438 = vmatpush2.msra.mxu0 0.0
    %1439 = vmatprep.subr.mxu0 0.0
    %1440 = vmatpush2.msra.mxu0 0.0
    %1441 = vmatprep.subr.mxu0 0.0
    %1442 = vmatpush2.msra.mxu0 0.0
    %1443 = vmatprep.subr.mxu0 0.0
    %1444 = vmatpush2.msra.mxu0 0.0
    %1445 = vmatprep.subr.mxu0 0.0
    %1446 = vmatpush2.msra.mxu0 0.0
    %1447 = vmatprep.subr.mxu0 0.0
    %1448 = vmatpush2.msra.mxu0 0.0
    %1449 = vmatprep.subr.mxu0 0.0
    %1450 = vmatpush2.msra.mxu0 0.0
    %1451 = vmatprep.subr.mxu0 0.0
    %1452 = vmatpush2.msra.mxu0 0.0
    %1453 = vmatprep.subr.mxu0 0.0
    %1454 = vmatpush2.msra.mxu0 0.0
    %1455 = vmatprep.subr.mxu0 0.0
    %1456 = vmatpush2.msra.mxu0 0.0
    %1457 = vmatprep.subr.mxu0 0.0
    %1458 = vmatpush2.msra.mxu0 0.0
    %1459 = vmatprep.subr.mxu0 0.0
    %1460 = vmatpush2.msra.mxu0 0.0
    %1461 = vmatprep.mubr.f32.mxu0 0.0
    %1462 = vmatmul.mubr.f32.gmra.mxu0 %v1395
    %v1463 = vpop.f32.mrf.mxu0
    %v1464 = vadd.f32 %v1391, %v1463
    %v1465 = vpop.f32.mrf.mxu0
    %1466 = vdwg.mxu0
    %vm1467 = vcmask 33792
    %v1468 = vsel %vm1467, %v1464, -inf
    %1469 = vmax.xlane.f32.xlu0 %v1468
    %v1470 = vpop.xlane.xlu0 %1469
    %v1471 = vsub.f32 %v1464, %v1470
    %v1472 = vmul.f32 %v1471, 1.442695
    %v1473 = vpow.pop %v1472
    %v1474 = vsel %vm1467, %v1473, 0.0
    %1475 = vadd.xlane.f32.xlu0 %v1474
    %v1476 = vpop.xlane.xlu0 %1475
    %v1477 = vrcp.pop %v1476
    %v1478 = vmul.f32 %v1476, %v1477
    %v1479 = vsub.f32 2.0, %v1478
    %v1480 = vmul.f32 %v1477, %v1479
    %v1481 = vmul.f32 %v1473, %v1480
    %1482 = vst.msk [vmem:[#allocation2] sm:$0x3] %vm1467, %v1481
    // Predicated region
    $region42: #{rnn_forward.1} parent=1 // pred_check
      _
    $region43: #{rnn_forward.1} parent=1 // pred_check_branch
      %1484 = sbr.rel (0) target = $region45
    $region44: #{rnn_forward.1} parent=1 // pred_region
      %s1486 = ssub.s32 32, 32
      %1487 = vsyncadd [#allocation3], %s1486
      %s1489 = sshll.u32 [#allocation2], 4
      %s1490 = int_to_ptr.vmem [resolvable:$true] %s1489
      %1492 = dma.vmem_to_hbm [thread:$0]  %s1490, 32, %s10, [#allocation3]
    $region45: #{rnn_forward.1} parent=1 // pred_fallthru
      _
    // Predicated region
    $region46: #{rnn_forward.1} parent=1 // pred_check
      _
    $region47: #{rnn_forward.1} parent=1 // pred_check_branch
      %1494 = sbr.rel (0) target = $region49
    $region48: #{rnn_forward.1} parent=1 // pred_region
      %1495 = dma.done [#allocation3], 32
    $region49: #{rnn_forward.1} parent=1 // pred_fallthru
      _
    %1496 = vsyncpa [#allocation3], 1

</llo_original>
